<compile_context>
chip_gen: v6e
topology: v6e:2x2x1
jax: 0.10.0
libtpu: 0.0.40
codegen_flags: <defaults>
</compile_context>

<pallas_src>
import jax
import jax.numpy as jnp
from jax.experimental import pallas as pl
from jax.experimental.pallas import tpu as pltpu

INNER_LR = 0.1  # finetune (inner-loop) SGD learning rate, finetune=1 step


def _maml_block_kernel(w1_ref, b1_ref, w2_ref, b2_ref,
                       sx_ref, sy_ref, qx_ref, qy_ref, o_ref):
  """One grid step == one block of B tasks: inner SGD step + query eval."""
  B, Ns, D = sx_ref.shape
  Nq = qx_ref.shape[1]
  H = w1_ref.shape[1]

  w1 = w1_ref[...]                                 # (D, H)  possibly bf16 (MXU input)
  b1 = b1_ref[...].astype(jnp.float32)             # (1, H)
  w2 = w2_ref[...].astype(jnp.float32)             # (1, H)
  b2 = b2_ref[0]                                   # scalar, from SMEM

  sx = sx_ref[...]                                 # (B, Ns, D) possibly bf16
  qx = qx_ref[...]                                 # (B, Nq, D) possibly bf16
  sy = sy_ref[...][:, 0, :].astype(jnp.float32)    # (B, Ns)  lane-dense labels
  qy = qy_ref[...][:, 0, :].astype(jnp.float32)    # (B, Nq)

  # ---- shared-weight forward: support AND query through the same w1/b1, each as
  #      one big (B*N, D) x (D, H) matmul (no per-task batched weights). ----
  z1 = (jnp.dot(sx.reshape(B * Ns, D), w1,
                preferred_element_type=jnp.float32) + b1).reshape(B, Ns, H)
  z1q0 = (jnp.dot(qx.reshape(B * Nq, D), w1,
                  preferred_element_type=jnp.float32) + b1).reshape(B, Nq, H)

  a1 = jnp.maximum(z1, 0.0)                                        # (B, Ns, H)
  z2 = jnp.sum(a1 * w2, axis=-1) + b2                              # (B, Ns)

  # ---- manual backward of per-task mean BCE-with-logits (exact, stable) ----
  ez = jnp.exp(-jnp.abs(z2))
  p = jnp.where(z2 >= 0.0, 1.0, ez) / (1.0 + ez)                   # sigmoid, f32
  dz2 = (p - sy) * (1.0 / float(Ns))                               # (B, Ns)
  dz2c = dz2[:, :, None]                                           # (B, Ns, 1)
  dW2 = jnp.sum(a1 * dz2c, axis=1, keepdims=True)                  # (B, 1, H)
  db2 = jnp.sum(dz2, axis=-1, keepdims=True)                       # (B, 1)
  dz1 = jnp.where(z1 > 0.0, dz2c * w2, 0.0)                        # (B, Ns, H)
  db1 = jnp.sum(dz1, axis=1, keepdims=True)                        # (B, 1, H)

  # ---- one finetune SGD step + query forward, reassociated so the (B, D, H)
  #      dW1 / adapted-w1 tensors are never built:
  #      qx @ w1a + b1a = (qx @ w1 + b1) - lr * ((qx @ sx^T) @ dz1 + db1)      ----
  gqs = jnp.einsum('bqd,bnd->bqn', qx, sx,
                   preferred_element_type=jnp.float32)             # (B, Nq, Ns)
  qx_dW1 = jnp.einsum('bqn,bnh->bqh', gqs, dz1,
                      preferred_element_type=jnp.float32)          # (B, Nq, H)
  z1q = z1q0 - INNER_LR * (qx_dW1 + db1)                           # (B, Nq, H)
  a1q = jnp.maximum(z1q, 0.0)
  w2a = w2 - INNER_LR * dW2                                        # (B, 1, H)
  b2a = b2 - INNER_LR * db2                                        # (B, 1)
  z2q = jnp.sum(a1q * w2a, axis=-1) + b2a                          # (B, Nq)

  # ---- query loss + metrics (per task, mean over the query set) ----
  bce = (jnp.maximum(z2q, 0.0) - z2q * qy
         + jnp.log1p(jnp.exp(-jnp.abs(z2q))))
  loss_b = jnp.mean(bce, axis=-1, keepdims=True)                   # (B, 1)

  # pred == qy is float equality on exact {0., 1.} labels (kept f32 on purpose).
  pred = (z2q > 0.0).astype(jnp.float32)
  acc = jnp.mean((pred == qy).astype(jnp.float32), axis=-1, keepdims=True)
  tp = jnp.sum(pred * qy, axis=-1, keepdims=True)
  fn = jnp.sum((1.0 - pred) * qy, axis=-1, keepdims=True)
  fp = jnp.sum(pred * (1.0 - qy), axis=-1, keepdims=True)
  tn = jnp.sum((1.0 - pred) * (1.0 - qy), axis=-1, keepdims=True)
  tpr = tp / jnp.maximum(tp + fn, 1.0)   # 0.0 (not NaN) when no positives — intentional
  fpr = fp / jnp.maximum(fp + tn, 1.0)   # 0.0 (not NaN) when no negatives — intentional

  # compact per-block result: sublane = task-in-block, lane = metric.
  # Four direct column stores (no lane-axis concatenate / XLU shuffle).
  o_ref[0, :, 0:1] = loss_b
  o_ref[0, :, 1:2] = acc
  o_ref[0, :, 2:3] = tpr
  o_ref[0, :, 3:4] = fpr


def _default_task_block(T):
  """Whole batch per grid step on single-TC chips; 2-way split on multi-TC chips."""
  n_tc = 1
  try:
    kind = jax.devices()[0].device_kind.lower()
    if ("v4" in kind) or ("v7" in kind):   # megacore / 2 TensorCores per chip
      n_tc = 2
  except Exception:
    pass
  if n_tc > 1 and T >= n_tc and T % n_tc == 0:
    return T // n_tc
  return T


def meta_forward(params, batch, task_block=None):
  """MetaTrainWrapper.forward (compute part).

  Returns (per_task_losses, (acc, tpr, fpr)) as device arrays of shape (T,).
  (The PyTorch `loss = [l for l in loss]` list-of-scalars is returned here as one
  (T,) array to avoid T separate host transfers.)
  """
  w1, b1, w2, b2 = params
  sx, sy, qx, qy = batch            # sx (T,Ns,D), sy (T,1,Ns), qx (T,Nq,D), qy (T,1,Nq)
  T, Ns, D = sx.shape
  Nq = qx.shape[1]
  H = w1.shape[1]

  # Keep example counts sublane-multiples so (B,N,D) <-> (B*N,D) reshapes are
  # layout no-ops (no hidden VMEM copies every grid step).
  assert Ns % 8 == 0 and Nq % 8 == 0, "Ns and Nq must be multiples of 8"

  B = _default_task_block(T) if task_block is None else task_block
  assert T % B == 0, "number of tasks must be divisible by the task block size"
  G = T // B

  out = pl.pallas_call(
      _maml_block_kernel,
      out_shape=jax.ShapeDtypeStruct((G, B, 4), jnp.float32),
      grid_spec=pltpu.PrefetchScalarGridSpec(
          num_scalar_prefetch=0,
          grid=(G,),
          in_specs=[
              pl.BlockSpec((D, H), lambda g: (0, 0)),                 # w1 (const)
              pl.BlockSpec((1, H), lambda g: (0, 0)),                 # b1 (const)
              pl.BlockSpec((1, H), lambda g: (0, 0)),                 # w2 (const)
              pl.BlockSpec(memory_space=pltpu.MemorySpace.SMEM),      # b2 scalar
              pl.BlockSpec((B, Ns, D), lambda g: (g, 0, 0)),          # support x
              pl.BlockSpec((B, 1, Ns), lambda g: (g, 0, 0)),          # support y
              pl.BlockSpec((B, Nq, D), lambda g: (g, 0, 0)),          # query x
              pl.BlockSpec((B, 1, Nq), lambda g: (g, 0, 0)),          # query y
          ],
          out_specs=pl.BlockSpec((1, B, 4), lambda g: (g, 0, 0)),
      ),
      compiler_params=pltpu.CompilerParams(
          dimension_semantics=("parallel",),
          # Explicit scoped-VMEM limit with headroom below v7x's 64 MiB physical,
          # so larger B / D / H blocks keep compiling there.
          vmem_limit_bytes=48 * 1024 * 1024,
      ),
  )(w1, b1, w2, b2, sx, sy, qx, qy)

  out = out.reshape(T, 4)
  per_task_loss = out[:, 0]
  metrics = (out[:, 1], out[:, 2], out[:, 3])   # (acc, tpr, fpr), each (T,)
  return per_task_loss, metrics


def init_params(key, D, H, x_dtype=jnp.bfloat16):
  k1, k2 = jax.random.split(key, 2)
  # w1 feeds the MXU directly -> store in the compute dtype (bf16 on v6e/v7x);
  # small params used elementwise (b1, w2, b2) stay f32.
  w1 = (jax.random.normal(k1, (D, H), jnp.float32) * 0.1).astype(x_dtype)
  b1 = jnp.zeros((1, H), jnp.float32)
  w2 = jax.random.normal(k2, (1, H), jnp.float32) * 0.1
  b2 = jnp.zeros((1,), jnp.float32)      # scalar bias, lives in SMEM
  return (w1, b1, w2, b2)


if __name__ == "__main__":
  # Small demo shapes; D and H are lane-/sublane-friendly (multiples of 128 / 8)
  # so vreg lanes and MXU operands are fully used.
  T, Ns, Nq, D, H = 8, 8, 8, 128, 128

  key = jax.random.PRNGKey(0)
  kp, k_sx, k_sy, k_qx, k_qy = jax.random.split(key, 5)

  # Features / w1 in bf16 (halves HBM+VMEM traffic, full-rate MXU on v6e/v7x);
  # labels and all elementwise / gradient math stay f32 inside the kernel.
  params = init_params(kp, D, H, x_dtype=jnp.bfloat16)
  sx = jax.random.normal(k_sx, (T, Ns, D), jnp.float32).astype(jnp.bfloat16)
  sy = jax.random.bernoulli(k_sy, 0.5, (T, 1, Ns)).astype(jnp.float32)   # lane-dense
  qx = jax.random.normal(k_qx, (T, Nq, D), jnp.float32).astype(jnp.bfloat16)
  qy = jax.random.bernoulli(k_qy, 0.5, (T, 1, Nq)).astype(jnp.float32)   # lane-dense

  losses, metrics = meta_forward(params, (sx, sy, qx, qy))
  jax.block_until_ready(losses)
  jax.block_until_ready(metrics)
  print("KERNEL_OK")
</pallas_src>

<mosaic_0001>
module attributes {stable_mosaic.version = 11 : i64} {
  func.func @_maml_block_kernel(%arg0: i32, %arg1: memref<128x128xbf16, #tpu.memory_space<vmem>>, %arg2: memref<1x128xf32, #tpu.memory_space<vmem>>, %arg3: memref<1x128xf32, #tpu.memory_space<vmem>>, %arg4: memref<1xf32, #tpu.memory_space<smem>>, %arg5: memref<8x8x128xbf16, #tpu.memory_space<vmem>>, %arg6: memref<8x1x8xf32, #tpu.memory_space<vmem>>, %arg7: memref<8x8x128xbf16, #tpu.memory_space<vmem>>, %arg8: memref<8x1x8xf32, #tpu.memory_space<vmem>>, %arg9: memref<1x8x4xf32, #tpu.memory_space<vmem>>) attributes {dimension_semantics = [#tpu.dimension_semantics<parallel>], iteration_bounds = array<i64: 1>, scalar_prefetch = 0 : i64, scratch_operands = 0 : i64, tpu.core_type = #tpu.core_type<tc>, window_params = [{pipeline_mode = #tpu.pipeline_mode<synchronous>, transform_indices = @transform_0, window_bounds = array<i64: 128, 128>}, {pipeline_mode = #tpu.pipeline_mode<synchronous>, transform_indices = @transform_1, window_bounds = array<i64: 1, 128>}, {pipeline_mode = #tpu.pipeline_mode<synchronous>, transform_indices = @transform_2, window_bounds = array<i64: 1, 128>}, {transform_indices = @transform_3, window_bounds = array<i64: 1>}, {transform_indices = @transform_4, window_bounds = array<i64: 8, 8, 128>}, {transform_indices = @transform_5, window_bounds = array<i64: 8, 1, 8>}, {transform_indices = @transform_6, window_bounds = array<i64: 8, 8, 128>}, {transform_indices = @transform_7, window_bounds = array<i64: 8, 1, 8>}, {transform_indices = @transform_8, window_bounds = array<i64: 1, 8, 4>}]} {
    %c0 = arith.constant 0 : index
    %c0_0 = arith.constant 0 : index
    %0 = vector.load %arg1[%c0, %c0_0] : memref<128x128xbf16, #tpu.memory_space<vmem>>, vector<128x128xbf16>
    %c0_1 = arith.constant 0 : index
    %c0_2 = arith.constant 0 : index
    %1 = vector.load %arg2[%c0_1, %c0_2] : memref<1x128xf32, #tpu.memory_space<vmem>>, vector<1x128xf32>
    %c0_3 = arith.constant 0 : index
    %c0_4 = arith.constant 0 : index
    %2 = vector.load %arg3[%c0_3, %c0_4] : memref<1x128xf32, #tpu.memory_space<vmem>>, vector<1x128xf32>
    %c0_5 = arith.constant 0 : index
    %3 = memref.load %arg4[%c0_5] : memref<1xf32, #tpu.memory_space<smem>>
    %c0_6 = arith.constant 0 : index
    %c0_7 = arith.constant 0 : index
    %c0_8 = arith.constant 0 : index
    %4 = vector.load %arg5[%c0_6, %c0_7, %c0_8] : memref<8x8x128xbf16, #tpu.memory_space<vmem>>, vector<8x8x128xbf16>
    %c0_9 = arith.constant 0 : index
    %c0_10 = arith.constant 0 : index
    %c0_11 = arith.constant 0 : index
    %5 = vector.load %arg7[%c0_9, %c0_10, %c0_11] : memref<8x8x128xbf16, #tpu.memory_space<vmem>>, vector<8x8x128xbf16>
    %c0_12 = arith.constant 0 : index
    %c0_13 = arith.constant 0 : index
    %c0_14 = arith.constant 0 : index
    %6 = vector.load %arg6[%c0_12, %c0_13, %c0_14] : memref<8x1x8xf32, #tpu.memory_space<vmem>>, vector<8x1x8xf32>
    %7 = vector.shape_cast %6 : vector<8x1x8xf32> to vector<8x8xf32>
    %c0_15 = arith.constant 0 : index
    %c0_16 = arith.constant 0 : index
    %c0_17 = arith.constant 0 : index
    %8 = vector.load %arg8[%c0_15, %c0_16, %c0_17] : memref<8x1x8xf32, #tpu.memory_space<vmem>>, vector<8x1x8xf32>
    %9 = vector.shape_cast %8 : vector<8x1x8xf32> to vector<8x8xf32>
    %10 = vector.shape_cast %4 : vector<8x8x128xbf16> to vector<64x128xbf16>
    %cst = arith.constant dense<0.000000e+00> : vector<64x128xf32>
    %11 = tpu.matmul %10, %0, %cst {dimension_numbers = #tpu.dot_dimension_numbers<[1], [0], [0], [1], [0, 0, 1, 1], [], []>} : vector<64x128xbf16>, vector<128x128xbf16>, vector<64x128xf32> -> vector<64x128xf32>
    %12 = vector.broadcast %1 : vector<1x128xf32> to vector<64x128xf32>
    %13 = arith.addf %11, %12 : vector<64x128xf32>
    %14 = vector.shape_cast %13 : vector<64x128xf32> to vector<8x8x128xf32>
    %15 = vector.shape_cast %5 : vector<8x8x128xbf16> to vector<64x128xbf16>
    %cst_18 = arith.constant dense<0.000000e+00> : vector<64x128xf32>
    %16 = tpu.matmul %15, %0, %cst_18 {dimension_numbers = #tpu.dot_dimension_numbers<[1], [0], [0], [1], [0, 0, 1, 1], [], []>} : vector<64x128xbf16>, vector<128x128xbf16>, vector<64x128xf32> -> vector<64x128xf32>
    %17 = vector.broadcast %1 : vector<1x128xf32> to vector<64x128xf32>
    %18 = arith.addf %16, %17 : vector<64x128xf32>
    %19 = vector.shape_cast %18 : vector<64x128xf32> to vector<8x8x128xf32>
    %cst_19 = arith.constant 0.000000e+00 : f32
    %20 = vector.broadcast %cst_19 : f32 to vector<8x8x128xf32>
    %21 = arith.maximumf %14, %20 : vector<8x8x128xf32>
    %22 = vector.shape_cast %2 : vector<1x128xf32> to vector<1x1x128xf32>
    %23 = vector.broadcast %22 : vector<1x1x128xf32> to vector<8x8x128xf32>
    %24 = arith.mulf %21, %23 : vector<8x8x128xf32>
    %cst_20 = arith.constant dense<0.000000e+00> : vector<8x8xf32>
    %25 = vector.multi_reduction <add>, %24, %cst_20 [2] : vector<8x8x128xf32> to vector<8x8xf32>
    %26 = vector.broadcast %3 : f32 to vector<8x8xf32>
    %27 = arith.addf %25, %26 : vector<8x8xf32>
    %28 = math.absf %27 : vector<8x8xf32>
    %cst_21 = arith.constant 0.000000e+00 : f32
    %29 = vector.broadcast %cst_21 : f32 to vector<8x8xf32>
    %30 = arith.subf %29, %28 : vector<8x8xf32>
    %31 = math.exp %30 : vector<8x8xf32>
    %cst_22 = arith.constant 0.000000e+00 : f32
    %32 = vector.broadcast %cst_22 : f32 to vector<8x8xf32>
    %33 = arith.cmpf oge, %27, %32 : vector<8x8xf32>
    %cst_23 = arith.constant 1.000000e+00 : f32
    %34 = vector.broadcast %cst_23 : f32 to vector<8x8xf32>
    %35 = arith.select %33, %34, %31 : vector<8x8xi1>, vector<8x8xf32>
    %cst_24 = arith.constant 1.000000e+00 : f32
    %36 = vector.broadcast %cst_24 : f32 to vector<8x8xf32>
    %37 = arith.addf %36, %31 : vector<8x8xf32>
    %38 = arith.divf %35, %37 : vector<8x8xf32>
    %39 = arith.subf %38, %7 : vector<8x8xf32>
    %cst_25 = arith.constant 1.250000e-01 : f32
    %40 = vector.broadcast %cst_25 : f32 to vector<8x8xf32>
    %41 = arith.mulf %39, %40 : vector<8x8xf32>
    %42 = vector.shape_cast %41 : vector<8x8xf32> to vector<8x8x1xf32>
    %43 = vector.broadcast %42 : vector<8x8x1xf32> to vector<8x8x128xf32>
    %44 = arith.mulf %21, %43 : vector<8x8x128xf32>
    %cst_26 = arith.constant dense<0.000000e+00> : vector<8x128xf32>
    %45 = vector.multi_reduction <add>, %44, %cst_26 [1] : vector<8x8x128xf32> to vector<8x128xf32>
    %46 = vector.shape_cast %45 : vector<8x128xf32> to vector<8x1x128xf32>
    %cst_27 = arith.constant dense<0.000000e+00> : vector<8xf32>
    %47 = vector.multi_reduction <add>, %41, %cst_27 [1] : vector<8x8xf32> to vector<8xf32>
    %48 = vector.shape_cast %47 : vector<8xf32> to vector<8x1xf32>
    %cst_28 = arith.constant 0.000000e+00 : f32
    %49 = vector.broadcast %cst_28 : f32 to vector<8x8x128xf32>
    %50 = arith.cmpf ogt, %14, %49 : vector<8x8x128xf32>
    %51 = vector.shape_cast %2 : vector<1x128xf32> to vector<1x1x128xf32>
    %52 = vector.broadcast %42 : vector<8x8x1xf32> to vector<8x8x128xf32>
    %53 = vector.broadcast %51 : vector<1x1x128xf32> to vector<8x8x128xf32>
    %54 = arith.mulf %52, %53 : vector<8x8x128xf32>
    %cst_29 = arith.constant 0.000000e+00 : f32
    %55 = vector.broadcast %cst_29 : f32 to vector<8x8x128xf32>
    %56 = arith.select %50, %54, %55 : vector<8x8x128xi1>, vector<8x8x128xf32>
    %cst_30 = arith.constant dense<0.000000e+00> : vector<8x128xf32>
    %57 = vector.multi_reduction <add>, %56, %cst_30 [1] : vector<8x8x128xf32> to vector<8x128xf32>
    %58 = vector.shape_cast %57 : vector<8x128xf32> to vector<8x1x128xf32>
    "tpu.trace_start"() <{level = 10 : i32, message = "bqd,bnd->bqn"}> : () -> ()
    %cst_31 = arith.constant dense<0.000000e+00> : vector<8x8x8xf32>
    %59 = tpu.matmul %5, %4, %cst_31 {dimension_numbers = #tpu.dot_dimension_numbers<[2], [2], [1], [1], [0, 0, 0, 1, 1, 1], [0], [0]>} : vector<8x8x128xbf16>, vector<8x8x128xbf16>, vector<8x8x8xf32> -> vector<8x8x8xf32>
    "tpu.trace_stop"() : () -> ()
    "tpu.trace_start"() <{level = 10 : i32, message = "bqn,bnh->bqh"}> : () -> ()
    %cst_32 = arith.constant dense<0.000000e+00> : vector<8x8x128xf32>
    %60 = tpu.matmul %59, %56, %cst_32 {dimension_numbers = #tpu.dot_dimension_numbers<[2], [1], [1], [2], [0, 0, 0, 1, 1, 2], [0], [0]>} : vector<8x8x8xf32>, vector<8x8x128xf32>, vector<8x8x128xf32> -> vector<8x8x128xf32>
    "tpu.trace_stop"() : () -> ()
    %61 = vector.broadcast %58 : vector<8x1x128xf32> to vector<8x8x128xf32>
    %62 = arith.addf %60, %61 : vector<8x8x128xf32>
    %cst_33 = arith.constant 1.000000e-01 : f32
    %63 = vector.broadcast %cst_33 : f32 to vector<8x8x128xf32>
    %64 = arith.mulf %63, %62 : vector<8x8x128xf32>
    %65 = arith.subf %19, %64 : vector<8x8x128xf32>
    %cst_34 = arith.constant 0.000000e+00 : f32
    %66 = vector.broadcast %cst_34 : f32 to vector<8x8x128xf32>
    %67 = arith.maximumf %65, %66 : vector<8x8x128xf32>
    %cst_35 = arith.constant 1.000000e-01 : f32
    %68 = vector.broadcast %cst_35 : f32 to vector<8x1x128xf32>
    %69 = arith.mulf %68, %46 : vector<8x1x128xf32>
    %70 = vector.shape_cast %2 : vector<1x128xf32> to vector<1x1x128xf32>
    %71 = vector.broadcast %70 : vector<1x1x128xf32> to vector<8x1x128xf32>
    %72 = arith.subf %71, %69 : vector<8x1x128xf32>
    %cst_36 = arith.constant 1.000000e-01 : f32
    %73 = vector.broadcast %cst_36 : f32 to vector<8x1xf32>
    %74 = arith.mulf %73, %48 : vector<8x1xf32>
    %75 = vector.broadcast %3 : f32 to vector<8x1xf32>
    %76 = arith.subf %75, %74 : vector<8x1xf32>
    %77 = vector.broadcast %72 : vector<8x1x128xf32> to vector<8x8x128xf32>
    %78 = arith.mulf %67, %77 : vector<8x8x128xf32>
    %cst_37 = arith.constant dense<0.000000e+00> : vector<8x8xf32>
    %79 = vector.multi_reduction <add>, %78, %cst_37 [2] : vector<8x8x128xf32> to vector<8x8xf32>
    %80 = vector.broadcast %76 : vector<8x1xf32> to vector<8x8xf32>
    %81 = arith.addf %79, %80 : vector<8x8xf32>
    %cst_38 = arith.constant 0.000000e+00 : f32
    %82 = vector.broadcast %cst_38 : f32 to vector<8x8xf32>
    %83 = arith.maximumf %81, %82 : vector<8x8xf32>
    %84 = arith.mulf %81, %9 : vector<8x8xf32>
    %85 = arith.subf %83, %84 : vector<8x8xf32>
    %86 = math.absf %81 : vector<8x8xf32>
    %cst_39 = arith.constant 0.000000e+00 : f32
    %87 = vector.broadcast %cst_39 : f32 to vector<8x8xf32>
    %88 = arith.subf %87, %86 : vector<8x8xf32>
    %89 = math.exp %88 : vector<8x8xf32>
    %90 = math.log1p %89 : vector<8x8xf32>
    %91 = arith.addf %85, %90 : vector<8x8xf32>
    %cst_40 = arith.constant dense<0.000000e+00> : vector<8xf32>
    %92 = vector.multi_reduction <add>, %91, %cst_40 [1] : vector<8x8xf32> to vector<8xf32>
    %93 = vector.shape_cast %92 : vector<8xf32> to vector<8x1xf32>
    %cst_41 = arith.constant 8.000000e+00 : f32
    %94 = vector.broadcast %cst_41 : f32 to vector<8x1xf32>
    %95 = arith.divf %93, %94 : vector<8x1xf32>
    %cst_42 = arith.constant 0.000000e+00 : f32
    %96 = vector.broadcast %cst_42 : f32 to vector<8x8xf32>
    %97 = arith.cmpf ogt, %81, %96 : vector<8x8xf32>
    %98 = arith.extui %97 : vector<8x8xi1> to vector<8x8xi32>
    %99 = arith.sitofp %98 : vector<8x8xi32> to vector<8x8xf32>
    %100 = arith.cmpf oeq, %99, %9 : vector<8x8xf32>
    %101 = arith.extui %100 : vector<8x8xi1> to vector<8x8xi32>
    %102 = arith.sitofp %101 : vector<8x8xi32> to vector<8x8xf32>
    %cst_43 = arith.constant dense<0.000000e+00> : vector<8xf32>
    %103 = vector.multi_reduction <add>, %102, %cst_43 [1] : vector<8x8xf32> to vector<8xf32>
    %104 = vector.shape_cast %103 : vector<8xf32> to vector<8x1xf32>
    %cst_44 = arith.constant 8.000000e+00 : f32
    %105 = vector.broadcast %cst_44 : f32 to vector<8x1xf32>
    %106 = arith.divf %104, %105 : vector<8x1xf32>
    %107 = arith.mulf %99, %9 : vector<8x8xf32>
    %cst_45 = arith.constant dense<0.000000e+00> : vector<8xf32>
    %108 = vector.multi_reduction <add>, %107, %cst_45 [1] : vector<8x8xf32> to vector<8xf32>
    %109 = vector.shape_cast %108 : vector<8xf32> to vector<8x1xf32>
    %cst_46 = arith.constant 1.000000e+00 : f32
    %110 = vector.broadcast %cst_46 : f32 to vector<8x8xf32>
    %111 = arith.subf %110, %99 : vector<8x8xf32>
    %112 = arith.mulf %111, %9 : vector<8x8xf32>
    %cst_47 = arith.constant dense<0.000000e+00> : vector<8xf32>
    %113 = vector.multi_reduction <add>, %112, %cst_47 [1] : vector<8x8xf32> to vector<8xf32>
    %114 = vector.shape_cast %113 : vector<8xf32> to vector<8x1xf32>
    %cst_48 = arith.constant 1.000000e+00 : f32
    %115 = vector.broadcast %cst_48 : f32 to vector<8x8xf32>
    %116 = arith.subf %115, %9 : vector<8x8xf32>
    %117 = arith.mulf %99, %116 : vector<8x8xf32>
    %cst_49 = arith.constant dense<0.000000e+00> : vector<8xf32>
    %118 = vector.multi_reduction <add>, %117, %cst_49 [1] : vector<8x8xf32> to vector<8xf32>
    %119 = vector.shape_cast %118 : vector<8xf32> to vector<8x1xf32>
    %cst_50 = arith.constant 1.000000e+00 : f32
    %120 = vector.broadcast %cst_50 : f32 to vector<8x8xf32>
    %121 = arith.subf %120, %99 : vector<8x8xf32>
    %cst_51 = arith.constant 1.000000e+00 : f32
    %122 = vector.broadcast %cst_51 : f32 to vector<8x8xf32>
    %123 = arith.subf %122, %9 : vector<8x8xf32>
    %124 = arith.mulf %121, %123 : vector<8x8xf32>
    %cst_52 = arith.constant dense<0.000000e+00> : vector<8xf32>
    %125 = vector.multi_reduction <add>, %124, %cst_52 [1] : vector<8x8xf32> to vector<8xf32>
    %126 = vector.shape_cast %125 : vector<8xf32> to vector<8x1xf32>
    %127 = arith.addf %109, %114 : vector<8x1xf32>
    %cst_53 = arith.constant 1.000000e+00 : f32
    %128 = vector.broadcast %cst_53 : f32 to vector<8x1xf32>
    %129 = arith.maximumf %127, %128 : vector<8x1xf32>
    %130 = arith.divf %109, %129 : vector<8x1xf32>
    %131 = arith.addf %119, %126 : vector<8x1xf32>
    %cst_54 = arith.constant 1.000000e+00 : f32
    %132 = vector.broadcast %cst_54 : f32 to vector<8x1xf32>
    %133 = arith.maximumf %131, %132 : vector<8x1xf32>
    %134 = arith.divf %119, %133 : vector<8x1xf32>
    %c0_55 = arith.constant 0 : index
    %c0_56 = arith.constant 0 : index
    %c0_57 = arith.constant 0 : index
    %135 = vector.load %arg9[%c0_55, %c0_56, %c0_57] : memref<1x8x4xf32, #tpu.memory_space<vmem>>, vector<1x8x1xf32>
    %136 = vector.shape_cast %135 : vector<1x8x1xf32> to vector<8x1xf32>
    %137 = vector.shape_cast %95 : vector<8x1xf32> to vector<1x8x1xf32>
    tpu.vector_store %arg9[%c0_55, %c0_56, %c0_57], %137 {strides = array<i32>} : memref<1x8x4xf32, #tpu.memory_space<vmem>>, vector<1x8x1xf32>,
    %c0_58 = arith.constant 0 : index
    %c0_59 = arith.constant 0 : index
    %c1 = arith.constant 1 : index
    %138 = vector.load %arg9[%c0_58, %c0_59, %c1] : memref<1x8x4xf32, #tpu.memory_space<vmem>>, vector<1x8x1xf32>
    %139 = vector.shape_cast %138 : vector<1x8x1xf32> to vector<8x1xf32>
    %140 = vector.shape_cast %106 : vector<8x1xf32> to vector<1x8x1xf32>
    tpu.vector_store %arg9[%c0_58, %c0_59, %c1], %140 {strides = array<i32>} : memref<1x8x4xf32, #tpu.memory_space<vmem>>, vector<1x8x1xf32>,
    %c0_60 = arith.constant 0 : index
    %c0_61 = arith.constant 0 : index
    %c2 = arith.constant 2 : index
    %141 = vector.load %arg9[%c0_60, %c0_61, %c2] : memref<1x8x4xf32, #tpu.memory_space<vmem>>, vector<1x8x1xf32>
    %142 = vector.shape_cast %141 : vector<1x8x1xf32> to vector<8x1xf32>
    %143 = vector.shape_cast %130 : vector<8x1xf32> to vector<1x8x1xf32>
    tpu.vector_store %arg9[%c0_60, %c0_61, %c2], %143 {strides = array<i32>} : memref<1x8x4xf32, #tpu.memory_space<vmem>>, vector<1x8x1xf32>,
    %c0_62 = arith.constant 0 : index
    %c0_63 = arith.constant 0 : index
    %c3 = arith.constant 3 : index
    %144 = vector.load %arg9[%c0_62, %c0_63, %c3] : memref<1x8x4xf32, #tpu.memory_space<vmem>>, vector<1x8x1xf32>
    %145 = vector.shape_cast %144 : vector<1x8x1xf32> to vector<8x1xf32>
    %146 = vector.shape_cast %134 : vector<8x1xf32> to vector<1x8x1xf32>
    tpu.vector_store %arg9[%c0_62, %c0_63, %c3], %146 {strides = array<i32>} : memref<1x8x4xf32, #tpu.memory_space<vmem>>, vector<1x8x1xf32>,
    return
  }
  func.func @transform_0(%arg0: i32) -> (i32, i32) {
    %c0_i32 = arith.constant 0 : i32
    %c0_i32_0 = arith.constant 0 : i32
    %c0_i32_1 = arith.constant 0 : i32
    return %c0_i32, %c0_i32_0 : i32, i32
  }
  func.func @transform_1(%arg0: i32) -> (i32, i32) {
    %c0_i32 = arith.constant 0 : i32
    %c0_i32_0 = arith.constant 0 : i32
    %c0_i32_1 = arith.constant 0 : i32
    return %c0_i32, %c0_i32_0 : i32, i32
  }
  func.func @transform_2(%arg0: i32) -> (i32, i32) {
    %c0_i32 = arith.constant 0 : i32
    %c0_i32_0 = arith.constant 0 : i32
    %c0_i32_1 = arith.constant 0 : i32
    return %c0_i32, %c0_i32_0 : i32, i32
  }
  func.func @transform_3(%arg0: i32) -> i32 {
    %c0_i32 = arith.constant 0 : i32
    %c0_i32_0 = arith.constant 0 : i32
    return %c0_i32 : i32
  }
  func.func @transform_4(%arg0: i32) -> (i32, i32, i32) {
    %c0_i32 = arith.constant 0 : i32
    %c0_i32_0 = arith.constant 0 : i32
    %c0_i32_1 = arith.constant 0 : i32
    return %arg0, %c0_i32, %c0_i32_0 : i32, i32, i32
  }
  func.func @transform_5(%arg0: i32) -> (i32, i32, i32) {
    %c0_i32 = arith.constant 0 : i32
    %c0_i32_0 = arith.constant 0 : i32
    %c0_i32_1 = arith.constant 0 : i32
    return %arg0, %c0_i32, %c0_i32_0 : i32, i32, i32
  }
  func.func @transform_6(%arg0: i32) -> (i32, i32, i32) {
    %c0_i32 = arith.constant 0 : i32
    %c0_i32_0 = arith.constant 0 : i32
    %c0_i32_1 = arith.constant 0 : i32
    return %arg0, %c0_i32, %c0_i32_0 : i32, i32, i32
  }
  func.func @transform_7(%arg0: i32) -> (i32, i32, i32) {
    %c0_i32 = arith.constant 0 : i32
    %c0_i32_0 = arith.constant 0 : i32
    %c0_i32_1 = arith.constant 0 : i32
    return %arg0, %c0_i32, %c0_i32_0 : i32, i32, i32
  }
  func.func @transform_8(%arg0: i32) -> (i32, i32, i32) {
    %c0_i32 = arith.constant 0 : i32
    %c0_i32_0 = arith.constant 0 : i32
    %c0_i32_1 = arith.constant 0 : i32
    return %arg0, %c0_i32, %c0_i32_0 : i32, i32, i32
  }
}

</mosaic_0001>

<llo_original>
// kernel: tpu_custom_call.1
$region0: #{tpu_custom_call.1}
  #allocation0 [shape = 'u32[]', space=smem, size = 0x4, offset = 0x4, fixed_abs, tag = 'smem constant byte address 0x4 - core index']
  #allocation1 [shape = 'u32[144,128]{1,0:T(1,128)}', space=vmem, size = 0x12000, scoped, tag = 'internal scratch']
  #allocation2 [shape = 'f32[1]{0:T(128)S(6)}', space=smem, size = 0x200, scoped, tag = 'scoped memory for tpu_custom_call.1']
  %s0 = inlined_call_operand.hbm [shape: bf16[128,128], index: 0, kind: input, shape index: {}]
  %s1 = inlined_call_operand.vmem [shape: f32[1,128], index: 1, kind: input, shape index: {}]
  %s2 = inlined_call_operand.hbm [shape: f32[1,128], index: 2, kind: input, shape index: {}]
  %s3 = inlined_call_operand.<no memory space> [shape: f32[1], index: 3, kind: input, shape index: {}]
  %s4 = inlined_call_operand.hbm [shape: bf16[8,8,128], index: 4, kind: input, shape index: {}]
  %s5 = inlined_call_operand.vmem [shape: f32[8,1,8], index: 5, kind: input, shape index: {}]
  %s6 = inlined_call_operand.hbm [shape: bf16[8,8,128], index: 6, kind: input, shape index: {}]
  %s7 = inlined_call_operand.hbm [shape: f32[8,1,8], index: 7, kind: input, shape index: {}]
  %s8 = inlined_call_operand.vmem [shape: f32[1,8,4], index: 8, kind: output, shape index: {}]
  %s9 = sld [smem:[#allocation0]]
  $region62: #{tpu_custom_call.1} parent=0
    _
  %s11 = ssub.s32 1, %s9
  %s12 = scalar_select 0, %s11, %s9
  %13 = sst [smem:[#allocation2]] %s3
  $region1: #{tpu_custom_call.1} parent=0
    #allocation3 [shape = 'u8[32768]{0}', space=vmem, size = 0x8000, scoped, tag = 'input window, operand 0, single buffered']
    #allocation4 [shape = 's32[1]{0}', space=sflag, size = 0x4, scoped, tag = 'scoped memory for tpu_custom_call.1']
    #allocation5 [shape = 'u8[512]{0}', space=vmem, size = 0x400, scoped, tag = 'input window, operand 2, single buffered']
    #allocation6 [shape = 's32[1]{0}', space=sflag, size = 0x4, scoped, tag = 'scoped memory for tpu_custom_call.1']
    #allocation7 [shape = 'u8[16384]{0}', space=vmem, size = 0x4000, scoped, tag = 'input window, operand 4, single buffered']
    #allocation8 [shape = 'u8[16384]{0}', space=vmem, size = 0x4000, scoped, tag = 'input window, operand 6, single buffered']
    #allocation9 [shape = 's32[1]{0}', space=sflag, size = 0x4, scoped, tag = 'scoped memory for tpu_custom_call.1']
    #allocation10 [shape = 'u8[4096]{0}', space=vmem, size = 0x1000, scoped, tag = 'input window, operand 7, single buffered']
    %14 = vsyncpa [#allocation4], 0
    %15 = vsyncpa [#allocation6], 0
    %16 = vsyncpa [#allocation9], 0
    // Predicated region
    $region2: #{tpu_custom_call.1} parent=1 // pred_check
      _
    $region3: #{tpu_custom_call.1} parent=1 // pred_check_branch
      %18 = sbr.rel (0) target = $region5
    $region4: #{tpu_custom_call.1} parent=1 // pred_region
      %s20 = ssub.s32 1024, 1024
      %21 = vsyncadd [#allocation4], %s20
      %s22 = sshll.u32 [#allocation3], 4
      %s23 = int_to_ptr.vmem [resolvable:$true] %s22
      %28 = dma.hbm_to_vmem [thread:$0]  %s0, 1024, %s23, [#allocation4], 64, 64, 4
    $region5: #{tpu_custom_call.1} parent=1 // pred_fallthru
      _
    // Predicated region
    $region6: #{tpu_custom_call.1} parent=1 // pred_check
      _
    $region7: #{tpu_custom_call.1} parent=1 // pred_check_branch
      %30 = sbr.rel (0) target = $region9
    $region8: #{tpu_custom_call.1} parent=1 // pred_region
      _
    $region9: #{tpu_custom_call.1} parent=1 // pred_fallthru
      _
    // Predicated region
    $region10: #{tpu_custom_call.1} parent=1 // pred_check
      _
    $region11: #{tpu_custom_call.1} parent=1 // pred_check_branch
      %32 = sbr.rel (0) target = $region13
    $region12: #{tpu_custom_call.1} parent=1 // pred_region
      %s34 = ssub.s32 16, 16
      %35 = vsyncadd [#allocation6], %s34
      %s37 = sshll.u32 [#allocation5], 4
      %s38 = int_to_ptr.vmem [resolvable:$true] %s37
      %40 = dma.hbm_to_vmem [thread:$0]  %s2, 16, %s38, [#allocation6]
    $region13: #{tpu_custom_call.1} parent=1 // pred_fallthru
      _
    // Predicated region
    $region14: #{tpu_custom_call.1} parent=1 // pred_check
      _
    $region15: #{tpu_custom_call.1} parent=1 // pred_check_branch
      %42 = sbr.rel (0) target = $region17
    $region16: #{tpu_custom_call.1} parent=1 // pred_region
      _
    $region17: #{tpu_custom_call.1} parent=1 // pred_fallthru
      _
    // Predicated region
    $region18: #{tpu_custom_call.1} parent=1 // pred_check
      _
    $region19: #{tpu_custom_call.1} parent=1 // pred_check_branch
      %44 = sbr.rel (0) target = $region21
    $region20: #{tpu_custom_call.1} parent=1 // pred_region
      %s46 = ssub.s32 512, 512
      %47 = vsyncadd [#allocation6], %s46
      %s48 = sshll.u32 [#allocation7], 4
      %s49 = int_to_ptr.vmem [resolvable:$true] %s48
      %54 = dma.hbm_to_vmem [thread:$0]  %s4, 512, %s49, [#allocation6], 64, 64, 4
    $region21: #{tpu_custom_call.1} parent=1 // pred_fallthru
      _
    // Predicated region
    $region22: #{tpu_custom_call.1} parent=1 // pred_check
      _
    $region23: #{tpu_custom_call.1} parent=1 // pred_check_branch
      %56 = sbr.rel (0) target = $region25
    $region24: #{tpu_custom_call.1} parent=1 // pred_region
      _
    $region25: #{tpu_custom_call.1} parent=1 // pred_fallthru
      _
    // Predicated region
    $region26: #{tpu_custom_call.1} parent=1 // pred_check
      _
    $region27: #{tpu_custom_call.1} parent=1 // pred_check_branch
      %58 = sbr.rel (0) target = $region29
    $region28: #{tpu_custom_call.1} parent=1 // pred_region
      %s60 = ssub.s32 512, 512
      %61 = vsyncadd [#allocation9], %s60
      %s62 = sshll.u32 [#allocation8], 4
      %s63 = int_to_ptr.vmem [resolvable:$true] %s62
      %68 = dma.hbm_to_vmem [thread:$0]  %s6, 512, %s63, [#allocation9], 64, 64, 4
    $region29: #{tpu_custom_call.1} parent=1 // pred_fallthru
      _
    // Predicated region
    $region30: #{tpu_custom_call.1} parent=1 // pred_check
      _
    $region31: #{tpu_custom_call.1} parent=1 // pred_check_branch
      %70 = sbr.rel (0) target = $region33
    $region32: #{tpu_custom_call.1} parent=1 // pred_region
      %s72 = ssub.s32 128, 128
      %73 = vsyncadd [#allocation9], %s72
      %s74 = sshll.u32 [#allocation10], 4
      %s75 = int_to_ptr.vmem [resolvable:$true] %s74
      %80 = dma.hbm_to_vmem [thread:$0]  %s7, 128, %s75, [#allocation9], 16, 16, 1
    $region33: #{tpu_custom_call.1} parent=1 // pred_fallthru
      _
    // Predicated region
    $region34: #{tpu_custom_call.1} parent=1 // pred_check
      _
    $region35: #{tpu_custom_call.1} parent=1 // pred_check_branch
      %82 = sbr.rel (0) target = $region37
    $region36: #{tpu_custom_call.1} parent=1 // pred_region
      %83 = dma.done [#allocation4], 1024
    $region37: #{tpu_custom_call.1} parent=1 // pred_fallthru
      _
    // Predicated region
    $region38: #{tpu_custom_call.1} parent=1 // pred_check
      _
    $region39: #{tpu_custom_call.1} parent=1 // pred_check_branch
      %85 = sbr.rel (0) target = $region41
    $region40: #{tpu_custom_call.1} parent=1 // pred_region
      %86 = dma.done [#allocation6], 16
    $region41: #{tpu_custom_call.1} parent=1 // pred_fallthru
      _
    // Predicated region
    $region42: #{tpu_custom_call.1} parent=1 // pred_check
      _
    $region43: #{tpu_custom_call.1} parent=1 // pred_check_branch
      %88 = sbr.rel (0) target = $region45
    $region44: #{tpu_custom_call.1} parent=1 // pred_region
      %89 = dma.done [#allocation6], 512
    $region45: #{tpu_custom_call.1} parent=1 // pred_fallthru
      _
    // Predicated region
    $region46: #{tpu_custom_call.1} parent=1 // pred_check
      _
    $region47: #{tpu_custom_call.1} parent=1 // pred_check_branch
      %91 = sbr.rel (0) target = $region49
    $region48: #{tpu_custom_call.1} parent=1 // pred_region
      %92 = dma.done [#allocation9], 512
    $region49: #{tpu_custom_call.1} parent=1 // pred_fallthru
      _
    // Predicated region
    $region50: #{tpu_custom_call.1} parent=1 // pred_check
      _
    $region51: #{tpu_custom_call.1} parent=1 // pred_check_branch
      %94 = sbr.rel (0) target = $region53
    $region52: #{tpu_custom_call.1} parent=1 // pred_region
      %95 = dma.done [#allocation9], 128
    $region53: #{tpu_custom_call.1} parent=1 // pred_fallthru
      _
    %v97 = vld [vmem:[#allocation3] sm:$0xf]
    %v98 = vld [vmem:[#allocation3 + $0x4] sm:$0xf]
    %v99 = vld [vmem:[#allocation3 + $0x8] sm:$0xf]
    %v100 = vld [vmem:[#allocation3 + $0xc] sm:$0xf]
    %v101 = vld [vmem:[#allocation3 + $0x10] sm:$0xf]
    %v102 = vld [vmem:[#allocation3 + $0x14] sm:$0xf]
    %v103 = vld [vmem:[#allocation3 + $0x18] sm:$0xf]
    %v104 = vld [vmem:[#allocation3 + $0x1c] sm:$0xf]
    %v105 = vld [vmem:[#allocation3 + $0x20] sm:$0xf]
    %v106 = vld [vmem:[#allocation3 + $0x24] sm:$0xf]
    %v107 = vld [vmem:[#allocation3 + $0x28] sm:$0xf]
    %v108 = vld [vmem:[#allocation3 + $0x2c] sm:$0xf]
    %v109 = vld [vmem:[#allocation3 + $0x30] sm:$0xf]
    %v110 = vld [vmem:[#allocation3 + $0x34] sm:$0xf]
    %v111 = vld [vmem:[#allocation3 + $0x38] sm:$0xf]
    %v112 = vld [vmem:[#allocation3 + $0x3c] sm:$0xf]
    %v113 = vld [vmem:[%s1] sm:$0x1]
    %v114 = vld [vmem:[#allocation5] sm:$0x1]
    %s115 = sld [smem:[#allocation2]]
    %v116 = vld [vmem:[#allocation7] sm:$0xf]
    %v117 = vld [vmem:[#allocation7 + $0x4] sm:$0xf]
    %v118 = vld [vmem:[#allocation7 + $0x8] sm:$0xf]
    %v119 = vld [vmem:[#allocation7 + $0xc] sm:$0xf]
    %v120 = vld [vmem:[#allocation7 + $0x10] sm:$0xf]
    %v121 = vld [vmem:[#allocation7 + $0x14] sm:$0xf]
    %v122 = vld [vmem:[#allocation7 + $0x18] sm:$0xf]
    %v123 = vld [vmem:[#allocation7 + $0x1c] sm:$0xf]
    %v124 = vld [vmem:[#allocation8] sm:$0xf]
    %v125 = vld [vmem:[#allocation8 + $0x4] sm:$0xf]
    %v126 = vld [vmem:[#allocation8 + $0x8] sm:$0xf]
    %v127 = vld [vmem:[#allocation8 + $0xc] sm:$0xf]
    %v128 = vld [vmem:[#allocation8 + $0x10] sm:$0xf]
    %v129 = vld [vmem:[#allocation8 + $0x14] sm:$0xf]
    %v130 = vld [vmem:[#allocation8 + $0x18] sm:$0xf]
    %v131 = vld [vmem:[#allocation8 + $0x1c] sm:$0xf]
    %v132 = vld [vmem:[%s5] sm:$0x1]
    %v133 = vld [vmem:[%s5 + $0x1] sm:$0x1]
    %v134 = vld [vmem:[%s5 + $0x2] sm:$0x1]
    %v135 = vld [vmem:[%s5 + $0x3] sm:$0x1]
    %v136 = vld [vmem:[%s5 + $0x4] sm:$0x1]
    %v137 = vld [vmem:[%s5 + $0x5] sm:$0x1]
    %v138 = vld [vmem:[%s5 + $0x6] sm:$0x1]
    %v139 = vld [vmem:[%s5 + $0x7] sm:$0x1]
    %v140 = vld [vmem:[#allocation10] sm:$0x1]
    %v141 = vld [vmem:[#allocation10 + $0x1] sm:$0x1]
    %v142 = vld [vmem:[#allocation10 + $0x2] sm:$0x1]
    %v143 = vld [vmem:[#allocation10 + $0x3] sm:$0x1]
    %v144 = vld [vmem:[#allocation10 + $0x4] sm:$0x1]
    %v145 = vld [vmem:[#allocation10 + $0x5] sm:$0x1]
    %v146 = vld [vmem:[#allocation10 + $0x6] sm:$0x1]
    %v147 = vld [vmem:[#allocation10 + $0x7] sm:$0x1]
    %v149 = vlaneseq
    %v150 = vshrl.u32 %v149, 7
    %v151 = vsub.s32 0, %v150
    %v152 = vrot.slane %v113, %v151
    %v162 = vunpack.c.l.b16 %v116
    %v163 = vunpack.c.l.b16 %v117
    %v164 = vunpack.c.l.b16 %v118
    %v165 = vunpack.c.l.b16 %v119
    %v166 = vunpack.c.l.b16 %v120
    %v167 = vunpack.c.l.b16 %v121
    %v168 = vunpack.c.l.b16 %v122
    %v169 = vunpack.c.l.b16 %v123
    %v170 = vpack.c.b16 %v163, %v162
    %v171 = vpack.c.b16 %v165, %v164
    %v172 = vpack.c.b16 %v167, %v166
    %v173 = vpack.c.b16 %v169, %v168
    %v194 = vunpack.c.l.b16 %v97
    %v195 = vunpack.c.l.b16 %v98
    %v196 = vunpack.c.l.b16 %v99
    %v197 = vunpack.c.l.b16 %v100
    %v198 = vunpack.c.l.b16 %v101
    %v199 = vunpack.c.l.b16 %v102
    %v200 = vunpack.c.l.b16 %v103
    %v201 = vunpack.c.l.b16 %v104
    %v202 = vunpack.c.l.b16 %v105
    %v203 = vunpack.c.l.b16 %v106
    %v204 = vunpack.c.l.b16 %v107
    %v205 = vunpack.c.l.b16 %v108
    %v206 = vunpack.c.l.b16 %v109
    %v207 = vunpack.c.l.b16 %v110
    %v208 = vunpack.c.l.b16 %v111
    %v209 = vunpack.c.l.b16 %v112
    %v210 = vpack.c.b16 %v195, %v194
    %v211 = vpack.c.b16 %v197, %v196
    %v212 = vpack.c.b16 %v199, %v198
    %v213 = vpack.c.b16 %v201, %v200
    %v214 = vpack.c.b16 %v203, %v202
    %v215 = vpack.c.b16 %v205, %v204
    %v216 = vpack.c.b16 %v207, %v206
    %v217 = vpack.c.b16 %v209, %v208
    %226 = vmatprep.subr.bf16.mxu0 0
    %227 = vmatpush1.bf16.msra.mxu0 %v217
    %228 = vmatprep.subr.bf16.mxu0 0
    %229 = vmatpush1.bf16.msra.mxu0 %v216
    %230 = vmatprep.subr.bf16.mxu0 0
    %231 = vmatpush1.bf16.msra.mxu0 %v215
    %232 = vmatprep.subr.bf16.mxu0 0
    %233 = vmatpush1.bf16.msra.mxu0 %v214
    %234 = vmatprep.subr.bf16.mxu0 0
    %235 = vmatpush1.bf16.msra.mxu0 %v213
    %236 = vmatprep.subr.bf16.mxu0 0
    %237 = vmatpush1.bf16.msra.mxu0 %v212
    %238 = vmatprep.subr.bf16.mxu0 0
    %239 = vmatpush1.bf16.msra.mxu0 %v211
    %240 = vmatprep.subr.bf16.mxu0 0
    %241 = vmatpush1.bf16.msra.mxu0 %v210
    %242 = vmatprep.subr.bf16.mxu0 0
    %243 = vmatpush2.bf16.msra.mxu0 0
    %244 = vmatprep.subr.bf16.mxu0 0
    %245 = vmatpush2.bf16.msra.mxu0 0
    %246 = vmatprep.subr.bf16.mxu0 0
    %247 = vmatpush2.bf16.msra.mxu0 0
    %248 = vmatprep.subr.bf16.mxu0 0
    %249 = vmatpush2.bf16.msra.mxu0 0
    %250 = vmatprep.subr.bf16.mxu0 0
    %251 = vmatpush2.bf16.msra.mxu0 0
    %252 = vmatprep.subr.bf16.mxu0 0
    %253 = vmatpush2.bf16.msra.mxu0 0
    %254 = vmatprep.subr.bf16.mxu0 0
    %255 = vmatpush2.bf16.msra.mxu0 0
    %256 = vmatprep.subr.bf16.mxu0 0
    %257 = vmatpush2.bf16.msra.mxu0 0
    %258 = vmatprep.mubr.bf16.mxu0 0
    %259 = vmatmul.mubr.bf16.gmra.mxu0 %v170
    %v260 = vpop.f32.mrf.mxu0
    %v261 = vadd.f32 %v152, %v260
    %v262 = vpop.f32.mrf.mxu0
    %v263 = vpop.f32.mrf.mxu0
    %v264 = vadd.f32 %v152, %v263
    %v265 = vpop.f32.mrf.mxu0
    %266 = vmatprep.mubr.bf16.mxu0 0
    %267 = vmatmul.mubr.bf16.gmra.mxu0 %v171
    %v268 = vpop.f32.mrf.mxu0
    %v269 = vadd.f32 %v152, %v268
    %v270 = vpop.f32.mrf.mxu0
    %v271 = vpop.f32.mrf.mxu0
    %v272 = vadd.f32 %v152, %v271
    %v273 = vpop.f32.mrf.mxu0
    %274 = vmatprep.mubr.bf16.mxu0 0
    %275 = vmatmul.mubr.bf16.gmra.mxu0 %v172
    %v276 = vpop.f32.mrf.mxu0
    %v277 = vadd.f32 %v152, %v276
    %v278 = vpop.f32.mrf.mxu0
    %v279 = vpop.f32.mrf.mxu0
    %v280 = vadd.f32 %v152, %v279
    %v281 = vpop.f32.mrf.mxu0
    %282 = vmatprep.mubr.bf16.mxu0 0
    %283 = vmatmul.mubr.bf16.gmra.mxu0 %v173
    %v284 = vpop.f32.mrf.mxu0
    %v285 = vadd.f32 %v152, %v284
    %v286 = vpop.f32.mrf.mxu0
    %v287 = vpop.f32.mrf.mxu0
    %v288 = vadd.f32 %v152, %v287
    %v289 = vpop.f32.mrf.mxu0
    %290 = vdwg.mxu0
    %v299 = vunpack.c.l.b16 %v124
    %v300 = vunpack.c.l.b16 %v125
    %v301 = vunpack.c.l.b16 %v126
    %v302 = vunpack.c.l.b16 %v127
    %v303 = vunpack.c.l.b16 %v128
    %v304 = vunpack.c.l.b16 %v129
    %v305 = vunpack.c.l.b16 %v130
    %v306 = vunpack.c.l.b16 %v131
    %v307 = vpack.c.b16 %v300, %v299
    %v308 = vpack.c.b16 %v302, %v301
    %v309 = vpack.c.b16 %v304, %v303
    %v310 = vpack.c.b16 %v306, %v305
    %315 = vmatprep.subr.bf16.mxu0 0
    %316 = vmatpush1.bf16.msra.mxu0 %v217
    %317 = vmatprep.subr.bf16.mxu0 0
    %318 = vmatpush1.bf16.msra.mxu0 %v216
    %319 = vmatprep.subr.bf16.mxu0 0
    %320 = vmatpush1.bf16.msra.mxu0 %v215
    %321 = vmatprep.subr.bf16.mxu0 0
    %322 = vmatpush1.bf16.msra.mxu0 %v214
    %323 = vmatprep.subr.bf16.mxu0 0
    %324 = vmatpush1.bf16.msra.mxu0 %v213
    %325 = vmatprep.subr.bf16.mxu0 0
    %326 = vmatpush1.bf16.msra.mxu0 %v212
    %327 = vmatprep.subr.bf16.mxu0 0
    %328 = vmatpush1.bf16.msra.mxu0 %v211
    %329 = vmatprep.subr.bf16.mxu0 0
    %330 = vmatpush1.bf16.msra.mxu0 %v210
    %331 = vmatprep.subr.bf16.mxu0 0
    %332 = vmatpush2.bf16.msra.mxu0 0
    %333 = vmatprep.subr.bf16.mxu0 0
    %334 = vmatpush2.bf16.msra.mxu0 0
    %335 = vmatprep.subr.bf16.mxu0 0
    %336 = vmatpush2.bf16.msra.mxu0 0
    %337 = vmatprep.subr.bf16.mxu0 0
    %338 = vmatpush2.bf16.msra.mxu0 0
    %339 = vmatprep.subr.bf16.mxu0 0
    %340 = vmatpush2.bf16.msra.mxu0 0
    %341 = vmatprep.subr.bf16.mxu0 0
    %342 = vmatpush2.bf16.msra.mxu0 0
    %343 = vmatprep.subr.bf16.mxu0 0
    %344 = vmatpush2.bf16.msra.mxu0 0
    %345 = vmatprep.subr.bf16.mxu0 0
    %346 = vmatpush2.bf16.msra.mxu0 0
    %347 = vmatprep.mubr.bf16.mxu0 0
    %348 = vmatmul.mubr.bf16.gmra.mxu0 %v307
    %v349 = vpop.f32.mrf.mxu0
    %v350 = vadd.f32 %v152, %v349
    %v351 = vpop.f32.mrf.mxu0
    %v352 = vpop.f32.mrf.mxu0
    %v353 = vadd.f32 %v152, %v352
    %v354 = vpop.f32.mrf.mxu0
    %355 = vmatprep.mubr.bf16.mxu0 0
    %356 = vmatmul.mubr.bf16.gmra.mxu0 %v308
    %v357 = vpop.f32.mrf.mxu0
    %v358 = vadd.f32 %v152, %v357
    %v359 = vpop.f32.mrf.mxu0
    %v360 = vpop.f32.mrf.mxu0
    %v361 = vadd.f32 %v152, %v360
    %v362 = vpop.f32.mrf.mxu0
    %363 = vmatprep.mubr.bf16.mxu0 0
    %364 = vmatmul.mubr.bf16.gmra.mxu0 %v309
    %v365 = vpop.f32.mrf.mxu0
    %v366 = vadd.f32 %v152, %v365
    %v367 = vpop.f32.mrf.mxu0
    %v368 = vpop.f32.mrf.mxu0
    %v369 = vadd.f32 %v152, %v368
    %v370 = vpop.f32.mrf.mxu0
    %371 = vmatprep.mubr.bf16.mxu0 0
    %372 = vmatmul.mubr.bf16.gmra.mxu0 %v310
    %v373 = vpop.f32.mrf.mxu0
    %v374 = vadd.f32 %v152, %v373
    %v375 = vpop.f32.mrf.mxu0
    %v376 = vpop.f32.mrf.mxu0
    %v377 = vadd.f32 %v152, %v376
    %v378 = vpop.f32.mrf.mxu0
    %379 = vdwg.mxu0
    %v380 = vmax.f32 %v261, 0.0
    %v381 = vmax.f32 %v264, 0.0
    %v382 = vmax.f32 %v269, 0.0
    %v383 = vmax.f32 %v272, 0.0
    %v384 = vmax.f32 %v277, 0.0
    %v385 = vmax.f32 %v280, 0.0
    %v386 = vmax.f32 %v285, 0.0
    %v387 = vmax.f32 %v288, 0.0
    %v389 = vlaneseq
    %v390 = vshrl.u32 %v389, 7
    %v391 = vsub.s32 0, %v390
    %v392 = vrot.slane %v114, %v391
    %v394 = vmul.f32 %v380, %v392
    %v395 = vmul.f32 %v381, %v392
    %v396 = vmul.f32 %v382, %v392
    %v397 = vmul.f32 %v383, %v392
    %v398 = vmul.f32 %v384, %v392
    %v399 = vmul.f32 %v385, %v392
    %v400 = vmul.f32 %v386, %v392
    %v401 = vmul.f32 %v387, %v392
    %402 = vadd.xlane.f32.xlu0 %v394
    %v403 = vpop.xlane.xlu0 %402
    %404 = vadd.xlane.f32.xlu0 %v395
    %v405 = vpop.xlane.xlu0 %404
    %406 = vadd.xlane.f32.xlu0 %v396
    %v407 = vpop.xlane.xlu0 %406
    %408 = vadd.xlane.f32.xlu0 %v397
    %v409 = vpop.xlane.xlu0 %408
    %410 = vadd.xlane.f32.xlu0 %v398
    %v411 = vpop.xlane.xlu0 %410
    %412 = vadd.xlane.f32.xlu0 %v399
    %v413 = vpop.xlane.xlu0 %412
    %414 = vadd.xlane.f32.xlu0 %v400
    %v415 = vpop.xlane.xlu0 %414
    %416 = vadd.xlane.f32.xlu0 %v401
    %v417 = vpop.xlane.xlu0 %416
    %v418 = vstv %s115
    %v419 = vadd.f32 %v403, %v418
    %v420 = vadd.f32 %v405, %v418
    %v421 = vadd.f32 %v407, %v418
    %v422 = vadd.f32 %v409, %v418
    %v423 = vadd.f32 %v411, %v418
    %v424 = vadd.f32 %v413, %v418
    %v425 = vadd.f32 %v415, %v418
    %v426 = vadd.f32 %v417, %v418
    %v427 = vand.u32 2147483647, %v419
    %v428 = vand.u32 2147483647, %v420
    %v429 = vand.u32 2147483647, %v421
    %v430 = vand.u32 2147483647, %v422
    %v431 = vand.u32 2147483647, %v423
    %v432 = vand.u32 2147483647, %v424
    %v433 = vand.u32 2147483647, %v425
    %v434 = vand.u32 2147483647, %v426
    %v435 = vsub.f32 0.0, %v427
    %v436 = vsub.f32 0.0, %v428
    %v437 = vsub.f32 0.0, %v429
    %v438 = vsub.f32 0.0, %v430
    %v439 = vsub.f32 0.0, %v431
    %v440 = vsub.f32 0.0, %v432
    %v441 = vsub.f32 0.0, %v433
    %v442 = vsub.f32 0.0, %v434
    %v443 = vmul.f32 %v435, 1.442695
    %v444 = vpow.pop %v443
    %v445 = vmul.f32 %v436, 1.442695
    %v446 = vpow.pop %v445
    %v447 = vmul.f32 %v437, 1.442695
    %v448 = vpow.pop %v447
    %v449 = vmul.f32 %v438, 1.442695
    %v450 = vpow.pop %v449
    %v451 = vmul.f32 %v439, 1.442695
    %v452 = vpow.pop %v451
    %v453 = vmul.f32 %v440, 1.442695
    %v454 = vpow.pop %v453
    %v455 = vmul.f32 %v441, 1.442695
    %v456 = vpow.pop %v455
    %v457 = vmul.f32 %v442, 1.442695
    %v458 = vpow.pop %v457
    %vm459 = vcmp.ge.f32.partialorder %v419, 0.0
    %vm460 = vcmp.ge.f32.partialorder %v420, 0.0
    %vm461 = vcmp.ge.f32.partialorder %v421, 0.0
    %vm462 = vcmp.ge.f32.partialorder %v422, 0.0
    %vm463 = vcmp.ge.f32.partialorder %v423, 0.0
    %vm464 = vcmp.ge.f32.partialorder %v424, 0.0
    %vm465 = vcmp.ge.f32.partialorder %v425, 0.0
    %vm466 = vcmp.ge.f32.partialorder %v426, 0.0
    %v467 = vsel %vm459, 1.0, %v444
    %v468 = vsel %vm460, 1.0, %v446
    %v469 = vsel %vm461, 1.0, %v448
    %v470 = vsel %vm462, 1.0, %v450
    %v471 = vsel %vm463, 1.0, %v452
    %v472 = vsel %vm464, 1.0, %v454
    %v473 = vsel %vm465, 1.0, %v456
    %v474 = vsel %vm466, 1.0, %v458
    %v475 = vadd.f32 %v444, 1.0
    %v476 = vadd.f32 %v446, 1.0
    %v477 = vadd.f32 %v448, 1.0
    %v478 = vadd.f32 %v450, 1.0
    %v479 = vadd.f32 %v452, 1.0
    %v480 = vadd.f32 %v454, 1.0
    %v481 = vadd.f32 %v456, 1.0
    %v482 = vadd.f32 %v458, 1.0
    %v483 = vrcp.pop %v475
    %v484 = vmul.f32 %v467, %v483
    %v485 = vrcp.pop %v476
    %v486 = vmul.f32 %v468, %v485
    %v487 = vrcp.pop %v477
    %v488 = vmul.f32 %v469, %v487
    %v489 = vrcp.pop %v478
    %v490 = vmul.f32 %v470, %v489
    %v491 = vrcp.pop %v479
    %v492 = vmul.f32 %v471, %v491
    %v493 = vrcp.pop %v480
    %v494 = vmul.f32 %v472, %v493
    %v495 = vrcp.pop %v481
    %v496 = vmul.f32 %v473, %v495
    %v497 = vrcp.pop %v482
    %v498 = vmul.f32 %v474, %v497
    %v507 = vlaneseq
    %v508 = vshrl.u32 %v507, 7
    %v509 = vsub.s32 0, %v508
    %v510 = vrot.slane %v132, %v509
    %v511 = vlaneseq
    %v512 = vshrl.u32 %v511, 7
    %v513 = vsub.s32 0, %v512
    %v514 = vrot.slane %v133, %v513
    %v515 = vlaneseq
    %v516 = vshrl.u32 %v515, 7
    %v517 = vsub.s32 0, %v516
    %v518 = vrot.slane %v134, %v517
    %v519 = vlaneseq
    %v520 = vshrl.u32 %v519, 7
    %v521 = vsub.s32 0, %v520
    %v522 = vrot.slane %v135, %v521
    %v523 = vlaneseq
    %v524 = vshrl.u32 %v523, 7
    %v525 = vsub.s32 0, %v524
    %v526 = vrot.slane %v136, %v525
    %v527 = vlaneseq
    %v528 = vshrl.u32 %v527, 7
    %v529 = vsub.s32 0, %v528
    %v530 = vrot.slane %v137, %v529
    %v531 = vlaneseq
    %v532 = vshrl.u32 %v531, 7
    %v533 = vsub.s32 0, %v532
    %v534 = vrot.slane %v138, %v533
    %v535 = vlaneseq
    %v536 = vshrl.u32 %v535, 7
    %v537 = vsub.s32 0, %v536
    %v538 = vrot.slane %v139, %v537
    %540 = vbcast.lane.b32.xlu0 %v510, 256
    %v541 = vpop.permute.xlu0 %540
    %543 = vbcast.lane.b32.xlu0 %v514, 256
    %v544 = vpop.permute.xlu0 %543
    %546 = vbcast.lane.b32.xlu0 %v518, 256
    %v547 = vpop.permute.xlu0 %546
    %549 = vbcast.lane.b32.xlu0 %v522, 256
    %v550 = vpop.permute.xlu0 %549
    %552 = vbcast.lane.b32.xlu0 %v526, 256
    %v553 = vpop.permute.xlu0 %552
    %555 = vbcast.lane.b32.xlu0 %v530, 256
    %v556 = vpop.permute.xlu0 %555
    %558 = vbcast.lane.b32.xlu0 %v534, 256
    %v559 = vpop.permute.xlu0 %558
    %561 = vbcast.lane.b32.xlu0 %v538, 256
    %v562 = vpop.permute.xlu0 %561
    %v571 = vsub.f32 %v484, %v541
    %v572 = vsub.f32 %v486, %v544
    %v573 = vsub.f32 %v488, %v547
    %v574 = vsub.f32 %v490, %v550
    %v575 = vsub.f32 %v492, %v553
    %v576 = vsub.f32 %v494, %v556
    %v577 = vsub.f32 %v496, %v559
    %v578 = vsub.f32 %v498, %v562
    %v579 = vmul.f32 %v571, 0.125
    %v580 = vmul.f32 %v572, 0.125
    %v581 = vmul.f32 %v573, 0.125
    %v582 = vmul.f32 %v574, 0.125
    %v583 = vmul.f32 %v575, 0.125
    %v584 = vmul.f32 %v576, 0.125
    %v585 = vmul.f32 %v577, 0.125
    %v586 = vmul.f32 %v578, 0.125
    %588 = vset.pattern.permute.xlu0 0
    %589 = vperm.xlu0 %588, %v579
    %v590 = vpop.permute.xlu0 %589
    %593 = vset.pattern.permute.xlu0 0
    %594 = vperm.xlu0 %593, %v580
    %v595 = vpop.permute.xlu0 %594
    %598 = vset.pattern.permute.xlu0 0
    %599 = vperm.xlu0 %598, %v581
    %v600 = vpop.permute.xlu0 %599
    %603 = vset.pattern.permute.xlu0 0
    %604 = vperm.xlu0 %603, %v582
    %v605 = vpop.permute.xlu0 %604
    %608 = vset.pattern.permute.xlu0 0
    %609 = vperm.xlu0 %608, %v583
    %v610 = vpop.permute.xlu0 %609
    %613 = vset.pattern.permute.xlu0 0
    %614 = vperm.xlu0 %613, %v584
    %v615 = vpop.permute.xlu0 %614
    %618 = vset.pattern.permute.xlu0 0
    %619 = vperm.xlu0 %618, %v585
    %v620 = vpop.permute.xlu0 %619
    %623 = vset.pattern.permute.xlu0 0
    %624 = vperm.xlu0 %623, %v586
    %v625 = vpop.permute.xlu0 %624
    %v627 = vmul.f32 %v380, %v590
    %v628 = vmul.f32 %v381, %v595
    %v629 = vmul.f32 %v382, %v600
    %v630 = vmul.f32 %v383, %v605
    %v631 = vmul.f32 %v384, %v610
    %v632 = vmul.f32 %v385, %v615
    %v633 = vmul.f32 %v386, %v620
    %v634 = vmul.f32 %v387, %v625
    %v635 = vrot.slane %v627, 4
    %v636 = vadd.f32 %v627, %v635
    %v637 = vrot.slane %v636, 2
    %v638 = vadd.f32 %v636, %v637
    %v639 = vrot.slane %v638, 1
    %v640 = vadd.f32 %v638, %v639
    %v641 = vrot.slane %v628, 4
    %v642 = vadd.f32 %v628, %v641
    %v643 = vrot.slane %v642, 2
    %v644 = vadd.f32 %v642, %v643
    %v645 = vrot.slane %v644, 1
    %v646 = vadd.f32 %v644, %v645
    %v647 = vrot.slane %v629, 4
    %v648 = vadd.f32 %v629, %v647
    %v649 = vrot.slane %v648, 2
    %v650 = vadd.f32 %v648, %v649
    %v651 = vrot.slane %v650, 1
    %v652 = vadd.f32 %v650, %v651
    %v653 = vrot.slane %v630, 4
    %v654 = vadd.f32 %v630, %v653
    %v655 = vrot.slane %v654, 2
    %v656 = vadd.f32 %v654, %v655
    %v657 = vrot.slane %v656, 1
    %v658 = vadd.f32 %v656, %v657
    %v659 = vrot.slane %v631, 4
    %v660 = vadd.f32 %v631, %v659
    %v661 = vrot.slane %v660, 2
    %v662 = vadd.f32 %v660, %v661
    %v663 = vrot.slane %v662, 1
    %v664 = vadd.f32 %v662, %v663
    %v665 = vrot.slane %v632, 4
    %v666 = vadd.f32 %v632, %v665
    %v667 = vrot.slane %v666, 2
    %v668 = vadd.f32 %v666, %v667
    %v669 = vrot.slane %v668, 1
    %v670 = vadd.f32 %v668, %v669
    %v671 = vrot.slane %v633, 4
    %v672 = vadd.f32 %v633, %v671
    %v673 = vrot.slane %v672, 2
    %v674 = vadd.f32 %v672, %v673
    %v675 = vrot.slane %v674, 1
    %v676 = vadd.f32 %v674, %v675
    %v677 = vrot.slane %v634, 4
    %v678 = vadd.f32 %v634, %v677
    %v679 = vrot.slane %v678, 2
    %v680 = vadd.f32 %v678, %v679
    %v681 = vrot.slane %v680, 1
    %v682 = vadd.f32 %v680, %v681
    %v683 = vlaneseq
    %v684 = vand.u32 %v683, 127
    %v685 = vlaneseq
    %v686 = vshrl.u32 %v685, 7
    %v687 = vsub.s32 %v684, %v686
    %v688 = vrot.slane %v590, %v687
    %v689 = vlaneseq
    %v690 = vshrl.u32 %v689, 7
    %v691 = vsub.s32 %v684, %v690
    %v692 = vrot.slane %v595, %v691
    %v693 = vlaneseq
    %v694 = vshrl.u32 %v693, 7
    %v695 = vsub.s32 %v684, %v694
    %v696 = vrot.slane %v600, %v695
    %v697 = vlaneseq
    %v698 = vshrl.u32 %v697, 7
    %v699 = vsub.s32 %v684, %v698
    %v700 = vrot.slane %v605, %v699
    %v701 = vlaneseq
    %v702 = vshrl.u32 %v701, 7
    %v703 = vsub.s32 %v684, %v702
    %v704 = vrot.slane %v610, %v703
    %v705 = vlaneseq
    %v706 = vshrl.u32 %v705, 7
    %v707 = vsub.s32 %v684, %v706
    %v708 = vrot.slane %v615, %v707
    %v709 = vlaneseq
    %v710 = vshrl.u32 %v709, 7
    %v711 = vsub.s32 %v684, %v710
    %v712 = vrot.slane %v620, %v711
    %v713 = vlaneseq
    %v714 = vshrl.u32 %v713, 7
    %v715 = vsub.s32 %v684, %v714
    %v716 = vrot.slane %v625, %v715
    %vm717 = vcmask 1041409
    %v718 = vsel %vm717, %v692, %v688
    %vm719 = vcmask 1042434
    %v720 = vsel %vm719, %v696, %v718
    %vm721 = vcmask 1043459
    %v722 = vsel %vm721, %v700, %v720
    %vm723 = vcmask 1044484
    %v724 = vsel %vm723, %v704, %v722
    %vm725 = vcmask 1045509
    %v726 = vsel %vm725, %v708, %v724
    %vm727 = vcmask 1046534
    %v728 = vsel %vm727, %v712, %v726
    %vm729 = vcmask 1047559
    %v730 = vsel %vm729, %v716, %v728
    %vm732 = vcmask 64512
    %v733 = vsel %vm732, %v730, 0.0
    %734 = vadd.xlane.f32.xlu0 %v733
    %v735 = vpop.xlane.xlu0 %734
    %vm736 = vcmp.gt.f32.partialorder %v261, 0.0
    %vm737 = vcmp.gt.f32.partialorder %v264, 0.0
    %vm738 = vcmp.gt.f32.partialorder %v269, 0.0
    %vm739 = vcmp.gt.f32.partialorder %v272, 0.0
    %vm740 = vcmp.gt.f32.partialorder %v277, 0.0
    %vm741 = vcmp.gt.f32.partialorder %v280, 0.0
    %vm742 = vcmp.gt.f32.partialorder %v285, 0.0
    %vm743 = vcmp.gt.f32.partialorder %v288, 0.0
    %v744 = vmul.f32 %v590, %v392
    %v745 = vmul.f32 %v595, %v392
    %v746 = vmul.f32 %v600, %v392
    %v747 = vmul.f32 %v605, %v392
    %v748 = vmul.f32 %v610, %v392
    %v749 = vmul.f32 %v615, %v392
    %v750 = vmul.f32 %v620, %v392
    %v751 = vmul.f32 %v625, %v392
    %v752 = vsel %vm736, %v744, 0.0
    %v753 = vsel %vm737, %v745, 0.0
    %v754 = vsel %vm738, %v746, 0.0
    %v755 = vsel %vm739, %v747, 0.0
    %v756 = vsel %vm740, %v748, 0.0
    %v757 = vsel %vm741, %v749, 0.0
    %v758 = vsel %vm742, %v750, 0.0
    %v759 = vsel %vm743, %v751, 0.0
    %v760 = vrot.slane %v752, 4
    %v761 = vadd.f32 %v752, %v760
    %v762 = vrot.slane %v761, 2
    %v763 = vadd.f32 %v761, %v762
    %v764 = vrot.slane %v763, 1
    %v765 = vadd.f32 %v763, %v764
    %v766 = vrot.slane %v753, 4
    %v767 = vadd.f32 %v753, %v766
    %v768 = vrot.slane %v767, 2
    %v769 = vadd.f32 %v767, %v768
    %v770 = vrot.slane %v769, 1
    %v771 = vadd.f32 %v769, %v770
    %v772 = vrot.slane %v754, 4
    %v773 = vadd.f32 %v754, %v772
    %v774 = vrot.slane %v773, 2
    %v775 = vadd.f32 %v773, %v774
    %v776 = vrot.slane %v775, 1
    %v777 = vadd.f32 %v775, %v776
    %v778 = vrot.slane %v755, 4
    %v779 = vadd.f32 %v755, %v778
    %v780 = vrot.slane %v779, 2
    %v781 = vadd.f32 %v779, %v780
    %v782 = vrot.slane %v781, 1
    %v783 = vadd.f32 %v781, %v782
    %v784 = vrot.slane %v756, 4
    %v785 = vadd.f32 %v756, %v784
    %v786 = vrot.slane %v785, 2
    %v787 = vadd.f32 %v785, %v786
    %v788 = vrot.slane %v787, 1
    %v789 = vadd.f32 %v787, %v788
    %v790 = vrot.slane %v757, 4
    %v791 = vadd.f32 %v757, %v790
    %v792 = vrot.slane %v791, 2
    %v793 = vadd.f32 %v791, %v792
    %v794 = vrot.slane %v793, 1
    %v795 = vadd.f32 %v793, %v794
    %v796 = vrot.slane %v758, 4
    %v797 = vadd.f32 %v758, %v796
    %v798 = vrot.slane %v797, 2
    %v799 = vadd.f32 %v797, %v798
    %v800 = vrot.slane %v799, 1
    %v801 = vadd.f32 %v799, %v800
    %v802 = vrot.slane %v759, 4
    %v803 = vadd.f32 %v759, %v802
    %v804 = vrot.slane %v803, 2
    %v805 = vadd.f32 %v803, %v804
    %v806 = vrot.slane %v805, 1
    %v807 = vadd.f32 %v805, %v806
    %808 = vmatprep.subr.bf16.mxu0 0
    %809 = vmatpush1.bf16.xpose.msra.mxu0 0
    %810 = vmatprep.subr.bf16.mxu0 0
    %811 = vmatpush1.bf16.xpose.msra.mxu0 0
    %812 = vmatprep.subr.bf16.mxu0 0
    %813 = vmatpush1.bf16.xpose.msra.mxu0 0
    %814 = vmatprep.subr.bf16.mxu0 0
    %815 = vmatpush1.bf16.xpose.msra.mxu0 0
    %816 = vmatprep.subr.bf16.mxu0 0
    %817 = vmatpush1.bf16.xpose.msra.mxu0 0
    %818 = vmatprep.subr.bf16.mxu0 0
    %819 = vmatpush1.bf16.xpose.msra.mxu0 0
    %820 = vmatprep.subr.bf16.mxu0 0
    %821 = vmatpush1.bf16.xpose.msra.mxu0 0
    %822 = vmatprep.subr.bf16.mxu0 0
    %823 = vmatpush1.bf16.xpose.msra.mxu0 %v116
    %824 = vmatprep.subr.bf16.mxu0 0
    %825 = vmatpush2.bf16.xpose.msra.mxu0 0
    %826 = vmatprep.subr.bf16.mxu0 0
    %827 = vmatpush2.bf16.xpose.msra.mxu0 0
    %828 = vmatprep.subr.bf16.mxu0 0
    %829 = vmatpush2.bf16.xpose.msra.mxu0 0
    %830 = vmatprep.subr.bf16.mxu0 0
    %831 = vmatpush2.bf16.xpose.msra.mxu0 0
    %832 = vmatprep.subr.bf16.mxu0 0
    %833 = vmatpush2.bf16.xpose.msra.mxu0 0
    %834 = vmatprep.subr.bf16.mxu0 0
    %835 = vmatpush2.bf16.xpose.msra.mxu0 0
    %836 = vmatprep.subr.bf16.mxu0 0
    %837 = vmatpush2.bf16.xpose.msra.mxu0 0
    %838 = vmatprep.subr.bf16.mxu0 0
    %839 = vmatpush2.bf16.xpose.msra.mxu0 0
    %840 = vmatprep.mubr.bf16.mxu0 0
    %841 = vmatmul.mubr.bf16.gmra.mxu0 %v124
    %v842 = vpop.f32.mrf.mxu0
    %v843 = vadd.f32 0.0, %v842
    %v844 = vpop.f32.mrf.mxu0
    %v845 = vpop.f32.mrf.mxu0
    %v846 = vpop.f32.mrf.mxu0
    %847 = vdwg.mxu0
    %848 = vmatprep.subr.bf16.mxu0 0
    %849 = vmatpush1.bf16.xpose.msra.mxu0 0
    %850 = vmatprep.subr.bf16.mxu0 0
    %851 = vmatpush1.bf16.xpose.msra.mxu0 0
    %852 = vmatprep.subr.bf16.mxu0 0
    %853 = vmatpush1.bf16.xpose.msra.mxu0 0
    %854 = vmatprep.subr.bf16.mxu0 0
    %855 = vmatpush1.bf16.xpose.msra.mxu0 0
    %856 = vmatprep.subr.bf16.mxu0 0
    %857 = vmatpush1.bf16.xpose.msra.mxu0 0
    %858 = vmatprep.subr.bf16.mxu0 0
    %859 = vmatpush1.bf16.xpose.msra.mxu0 0
    %860 = vmatprep.subr.bf16.mxu0 0
    %861 = vmatpush1.bf16.xpose.msra.mxu0 0
    %862 = vmatprep.subr.bf16.mxu0 0
    %863 = vmatpush1.bf16.xpose.msra.mxu0 %v117
    %864 = vmatprep.subr.bf16.mxu0 0
    %865 = vmatpush2.bf16.xpose.msra.mxu0 0
    %866 = vmatprep.subr.bf16.mxu0 0
    %867 = vmatpush2.bf16.xpose.msra.mxu0 0
    %868 = vmatprep.subr.bf16.mxu0 0
    %869 = vmatpush2.bf16.xpose.msra.mxu0 0
    %870 = vmatprep.subr.bf16.mxu0 0
    %871 = vmatpush2.bf16.xpose.msra.mxu0 0
    %872 = vmatprep.subr.bf16.mxu0 0
    %873 = vmatpush2.bf16.xpose.msra.mxu0 0
    %874 = vmatprep.subr.bf16.mxu0 0
    %875 = vmatpush2.bf16.xpose.msra.mxu0 0
    %876 = vmatprep.subr.bf16.mxu0 0
    %877 = vmatpush2.bf16.xpose.msra.mxu0 0
    %878 = vmatprep.subr.bf16.mxu0 0
    %879 = vmatpush2.bf16.xpose.msra.mxu0 0
    %880 = vmatprep.mubr.bf16.mxu0 0
    %881 = vmatmul.mubr.bf16.gmra.mxu0 %v125
    %v882 = vpop.f32.mrf.mxu0
    %v883 = vadd.f32 0.0, %v882
    %v884 = vpop.f32.mrf.mxu0
    %v885 = vpop.f32.mrf.mxu0
    %v886 = vpop.f32.mrf.mxu0
    %887 = vdwg.mxu0
    %888 = vmatprep.subr.bf16.mxu0 0
    %889 = vmatpush1.bf16.xpose.msra.mxu0 0
    %890 = vmatprep.subr.bf16.mxu0 0
    %891 = vmatpush1.bf16.xpose.msra.mxu0 0
    %892 = vmatprep.subr.bf16.mxu0 0
    %893 = vmatpush1.bf16.xpose.msra.mxu0 0
    %894 = vmatprep.subr.bf16.mxu0 0
    %895 = vmatpush1.bf16.xpose.msra.mxu0 0
    %896 = vmatprep.subr.bf16.mxu0 0
    %897 = vmatpush1.bf16.xpose.msra.mxu0 0
    %898 = vmatprep.subr.bf16.mxu0 0
    %899 = vmatpush1.bf16.xpose.msra.mxu0 0
    %900 = vmatprep.subr.bf16.mxu0 0
    %901 = vmatpush1.bf16.xpose.msra.mxu0 0
    %902 = vmatprep.subr.bf16.mxu0 0
    %903 = vmatpush1.bf16.xpose.msra.mxu0 %v118
    %904 = vmatprep.subr.bf16.mxu0 0
    %905 = vmatpush2.bf16.xpose.msra.mxu0 0
    %906 = vmatprep.subr.bf16.mxu0 0
    %907 = vmatpush2.bf16.xpose.msra.mxu0 0
    %908 = vmatprep.subr.bf16.mxu0 0
    %909 = vmatpush2.bf16.xpose.msra.mxu0 0
    %910 = vmatprep.subr.bf16.mxu0 0
    %911 = vmatpush2.bf16.xpose.msra.mxu0 0
    %912 = vmatprep.subr.bf16.mxu0 0
    %913 = vmatpush2.bf16.xpose.msra.mxu0 0
    %914 = vmatprep.subr.bf16.mxu0 0
    %915 = vmatpush2.bf16.xpose.msra.mxu0 0
    %916 = vmatprep.subr.bf16.mxu0 0
    %917 = vmatpush2.bf16.xpose.msra.mxu0 0
    %918 = vmatprep.subr.bf16.mxu0 0
    %919 = vmatpush2.bf16.xpose.msra.mxu0 0
    %920 = vmatprep.mubr.bf16.mxu0 0
    %921 = vmatmul.mubr.bf16.gmra.mxu0 %v126
    %v922 = vpop.f32.mrf.mxu0
    %v923 = vadd.f32 0.0, %v922
    %v924 = vpop.f32.mrf.mxu0
    %v925 = vpop.f32.mrf.mxu0
    %v926 = vpop.f32.mrf.mxu0
    %927 = vdwg.mxu0
    %928 = vmatprep.subr.bf16.mxu0 0
    %929 = vmatpush1.bf16.xpose.msra.mxu0 0
    %930 = vmatprep.subr.bf16.mxu0 0
    %931 = vmatpush1.bf16.xpose.msra.mxu0 0
    %932 = vmatprep.subr.bf16.mxu0 0
    %933 = vmatpush1.bf16.xpose.msra.mxu0 0
    %934 = vmatprep.subr.bf16.mxu0 0
    %935 = vmatpush1.bf16.xpose.msra.mxu0 0
    %936 = vmatprep.subr.bf16.mxu0 0
    %937 = vmatpush1.bf16.xpose.msra.mxu0 0
    %938 = vmatprep.subr.bf16.mxu0 0
    %939 = vmatpush1.bf16.xpose.msra.mxu0 0
    %940 = vmatprep.subr.bf16.mxu0 0
    %941 = vmatpush1.bf16.xpose.msra.mxu0 0
    %942 = vmatprep.subr.bf16.mxu0 0
    %943 = vmatpush1.bf16.xpose.msra.mxu0 %v119
    %944 = vmatprep.subr.bf16.mxu0 0
    %945 = vmatpush2.bf16.xpose.msra.mxu0 0
    %946 = vmatprep.subr.bf16.mxu0 0
    %947 = vmatpush2.bf16.xpose.msra.mxu0 0
    %948 = vmatprep.subr.bf16.mxu0 0
    %949 = vmatpush2.bf16.xpose.msra.mxu0 0
    %950 = vmatprep.subr.bf16.mxu0 0
    %951 = vmatpush2.bf16.xpose.msra.mxu0 0
    %952 = vmatprep.subr.bf16.mxu0 0
    %953 = vmatpush2.bf16.xpose.msra.mxu0 0
    %954 = vmatprep.subr.bf16.mxu0 0
    %955 = vmatpush2.bf16.xpose.msra.mxu0 0
    %956 = vmatprep.subr.bf16.mxu0 0
    %957 = vmatpush2.bf16.xpose.msra.mxu0 0
    %958 = vmatprep.subr.bf16.mxu0 0
    %959 = vmatpush2.bf16.xpose.msra.mxu0 0
    %960 = vmatprep.mubr.bf16.mxu0 0
    %961 = vmatmul.mubr.bf16.gmra.mxu0 %v127
    %v962 = vpop.f32.mrf.mxu0
    %v963 = vadd.f32 0.0, %v962
    %v964 = vpop.f32.mrf.mxu0
    %v965 = vpop.f32.mrf.mxu0
    %v966 = vpop.f32.mrf.mxu0
    %967 = vdwg.mxu0
    %968 = vmatprep.subr.bf16.mxu0 0
    %969 = vmatpush1.bf16.xpose.msra.mxu0 0
    %970 = vmatprep.subr.bf16.mxu0 0
    %971 = vmatpush1.bf16.xpose.msra.mxu0 0
    %972 = vmatprep.subr.bf16.mxu0 0
    %973 = vmatpush1.bf16.xpose.msra.mxu0 0
    %974 = vmatprep.subr.bf16.mxu0 0
    %975 = vmatpush1.bf16.xpose.msra.mxu0 0
    %976 = vmatprep.subr.bf16.mxu0 0
    %977 = vmatpush1.bf16.xpose.msra.mxu0 0
    %978 = vmatprep.subr.bf16.mxu0 0
    %979 = vmatpush1.bf16.xpose.msra.mxu0 0
    %980 = vmatprep.subr.bf16.mxu0 0
    %981 = vmatpush1.bf16.xpose.msra.mxu0 0
    %982 = vmatprep.subr.bf16.mxu0 0
    %983 = vmatpush1.bf16.xpose.msra.mxu0 %v120
    %984 = vmatprep.subr.bf16.mxu0 0
    %985 = vmatpush2.bf16.xpose.msra.mxu0 0
    %986 = vmatprep.subr.bf16.mxu0 0
    %987 = vmatpush2.bf16.xpose.msra.mxu0 0
    %988 = vmatprep.subr.bf16.mxu0 0
    %989 = vmatpush2.bf16.xpose.msra.mxu0 0
    %990 = vmatprep.subr.bf16.mxu0 0
    %991 = vmatpush2.bf16.xpose.msra.mxu0 0
    %992 = vmatprep.subr.bf16.mxu0 0
    %993 = vmatpush2.bf16.xpose.msra.mxu0 0
    %994 = vmatprep.subr.bf16.mxu0 0
    %995 = vmatpush2.bf16.xpose.msra.mxu0 0
    %996 = vmatprep.subr.bf16.mxu0 0
    %997 = vmatpush2.bf16.xpose.msra.mxu0 0
    %998 = vmatprep.subr.bf16.mxu0 0
    %999 = vmatpush2.bf16.xpose.msra.mxu0 0
    %1000 = vmatprep.mubr.bf16.mxu0 0
    %1001 = vmatmul.mubr.bf16.gmra.mxu0 %v128
    %v1002 = vpop.f32.mrf.mxu0
    %v1003 = vadd.f32 0.0, %v1002
    %v1004 = vpop.f32.mrf.mxu0
    %v1005 = vpop.f32.mrf.mxu0
    %v1006 = vpop.f32.mrf.mxu0
    %1007 = vdwg.mxu0
    %1008 = vmatprep.subr.bf16.mxu0 0
    %1009 = vmatpush1.bf16.xpose.msra.mxu0 0
    %1010 = vmatprep.subr.bf16.mxu0 0
    %1011 = vmatpush1.bf16.xpose.msra.mxu0 0
    %1012 = vmatprep.subr.bf16.mxu0 0
    %1013 = vmatpush1.bf16.xpose.msra.mxu0 0
    %1014 = vmatprep.subr.bf16.mxu0 0
    %1015 = vmatpush1.bf16.xpose.msra.mxu0 0
    %1016 = vmatprep.subr.bf16.mxu0 0
    %1017 = vmatpush1.bf16.xpose.msra.mxu0 0
    %1018 = vmatprep.subr.bf16.mxu0 0
    %1019 = vmatpush1.bf16.xpose.msra.mxu0 0
    %1020 = vmatprep.subr.bf16.mxu0 0
    %1021 = vmatpush1.bf16.xpose.msra.mxu0 0
    %1022 = vmatprep.subr.bf16.mxu0 0
    %1023 = vmatpush1.bf16.xpose.msra.mxu0 %v121
    %1024 = vmatprep.subr.bf16.mxu0 0
    %1025 = vmatpush2.bf16.xpose.msra.mxu0 0
    %1026 = vmatprep.subr.bf16.mxu0 0
    %1027 = vmatpush2.bf16.xpose.msra.mxu0 0
    %1028 = vmatprep.subr.bf16.mxu0 0
    %1029 = vmatpush2.bf16.xpose.msra.mxu0 0
    %1030 = vmatprep.subr.bf16.mxu0 0
    %1031 = vmatpush2.bf16.xpose.msra.mxu0 0
    %1032 = vmatprep.subr.bf16.mxu0 0
    %1033 = vmatpush2.bf16.xpose.msra.mxu0 0
    %1034 = vmatprep.subr.bf16.mxu0 0
    %1035 = vmatpush2.bf16.xpose.msra.mxu0 0
    %1036 = vmatprep.subr.bf16.mxu0 0
    %1037 = vmatpush2.bf16.xpose.msra.mxu0 0
    %1038 = vmatprep.subr.bf16.mxu0 0
    %1039 = vmatpush2.bf16.xpose.msra.mxu0 0
    %1040 = vmatprep.mubr.bf16.mxu0 0
    %1041 = vmatmul.mubr.bf16.gmra.mxu0 %v129
    %v1042 = vpop.f32.mrf.mxu0
    %v1043 = vadd.f32 0.0, %v1042
    %v1044 = vpop.f32.mrf.mxu0
    %v1045 = vpop.f32.mrf.mxu0
    %v1046 = vpop.f32.mrf.mxu0
    %1047 = vdwg.mxu0
    %1048 = vmatprep.subr.bf16.mxu0 0
    %1049 = vmatpush1.bf16.xpose.msra.mxu0 0
    %1050 = vmatprep.subr.bf16.mxu0 0
    %1051 = vmatpush1.bf16.xpose.msra.mxu0 0
    %1052 = vmatprep.subr.bf16.mxu0 0
    %1053 = vmatpush1.bf16.xpose.msra.mxu0 0
    %1054 = vmatprep.subr.bf16.mxu0 0
    %1055 = vmatpush1.bf16.xpose.msra.mxu0 0
    %1056 = vmatprep.subr.bf16.mxu0 0
    %1057 = vmatpush1.bf16.xpose.msra.mxu0 0
    %1058 = vmatprep.subr.bf16.mxu0 0
    %1059 = vmatpush1.bf16.xpose.msra.mxu0 0
    %1060 = vmatprep.subr.bf16.mxu0 0
    %1061 = vmatpush1.bf16.xpose.msra.mxu0 0
    %1062 = vmatprep.subr.bf16.mxu0 0
    %1063 = vmatpush1.bf16.xpose.msra.mxu0 %v122
    %1064 = vmatprep.subr.bf16.mxu0 0
    %1065 = vmatpush2.bf16.xpose.msra.mxu0 0
    %1066 = vmatprep.subr.bf16.mxu0 0
    %1067 = vmatpush2.bf16.xpose.msra.mxu0 0
    %1068 = vmatprep.subr.bf16.mxu0 0
    %1069 = vmatpush2.bf16.xpose.msra.mxu0 0
    %1070 = vmatprep.subr.bf16.mxu0 0
    %1071 = vmatpush2.bf16.xpose.msra.mxu0 0
    %1072 = vmatprep.subr.bf16.mxu0 0
    %1073 = vmatpush2.bf16.xpose.msra.mxu0 0
    %1074 = vmatprep.subr.bf16.mxu0 0
    %1075 = vmatpush2.bf16.xpose.msra.mxu0 0
    %1076 = vmatprep.subr.bf16.mxu0 0
    %1077 = vmatpush2.bf16.xpose.msra.mxu0 0
    %1078 = vmatprep.subr.bf16.mxu0 0
    %1079 = vmatpush2.bf16.xpose.msra.mxu0 0
    %1080 = vmatprep.mubr.bf16.mxu0 0
    %1081 = vmatmul.mubr.bf16.gmra.mxu0 %v130
    %v1082 = vpop.f32.mrf.mxu0
    %v1083 = vadd.f32 0.0, %v1082
    %v1084 = vpop.f32.mrf.mxu0
    %v1085 = vpop.f32.mrf.mxu0
    %v1086 = vpop.f32.mrf.mxu0
    %1087 = vdwg.mxu0
    %1088 = vmatprep.subr.bf16.mxu0 0
    %1089 = vmatpush1.bf16.xpose.msra.mxu0 0
    %1090 = vmatprep.subr.bf16.mxu0 0
    %1091 = vmatpush1.bf16.xpose.msra.mxu0 0
    %1092 = vmatprep.subr.bf16.mxu0 0
    %1093 = vmatpush1.bf16.xpose.msra.mxu0 0
    %1094 = vmatprep.subr.bf16.mxu0 0
    %1095 = vmatpush1.bf16.xpose.msra.mxu0 0
    %1096 = vmatprep.subr.bf16.mxu0 0
    %1097 = vmatpush1.bf16.xpose.msra.mxu0 0
    %1098 = vmatprep.subr.bf16.mxu0 0
    %1099 = vmatpush1.bf16.xpose.msra.mxu0 0
    %1100 = vmatprep.subr.bf16.mxu0 0
    %1101 = vmatpush1.bf16.xpose.msra.mxu0 0
    %1102 = vmatprep.subr.bf16.mxu0 0
    %1103 = vmatpush1.bf16.xpose.msra.mxu0 %v123
    %1104 = vmatprep.subr.bf16.mxu0 0
    %1105 = vmatpush2.bf16.xpose.msra.mxu0 0
    %1106 = vmatprep.subr.bf16.mxu0 0
    %1107 = vmatpush2.bf16.xpose.msra.mxu0 0
    %1108 = vmatprep.subr.bf16.mxu0 0
    %1109 = vmatpush2.bf16.xpose.msra.mxu0 0
    %1110 = vmatprep.subr.bf16.mxu0 0
    %1111 = vmatpush2.bf16.xpose.msra.mxu0 0
    %1112 = vmatprep.subr.bf16.mxu0 0
    %1113 = vmatpush2.bf16.xpose.msra.mxu0 0
    %1114 = vmatprep.subr.bf16.mxu0 0
    %1115 = vmatpush2.bf16.xpose.msra.mxu0 0
    %1116 = vmatprep.subr.bf16.mxu0 0
    %1117 = vmatpush2.bf16.xpose.msra.mxu0 0
    %1118 = vmatprep.subr.bf16.mxu0 0
    %1119 = vmatpush2.bf16.xpose.msra.mxu0 0
    %1120 = vmatprep.mubr.bf16.mxu0 0
    %1121 = vmatmul.mubr.bf16.gmra.mxu0 %v131
    %v1122 = vpop.f32.mrf.mxu0
    %v1123 = vadd.f32 0.0, %v1122
    %v1124 = vpop.f32.mrf.mxu0
    %v1125 = vpop.f32.mrf.mxu0
    %v1126 = vpop.f32.mrf.mxu0
    %1127 = vdwg.mxu0
    %v1129 = vsel %vm732, %v843, 0
    %1131 = vmatprep.subr.mxu0 0.0
    %1132 = vmatpush1.msra.mxu0 0.0
    %1133 = vmatprep.subr.mxu0 0.0
    %1134 = vmatpush1.msra.mxu0 0.0
    %1135 = vmatprep.subr.mxu0 0.0
    %1136 = vmatpush1.msra.mxu0 0.0
    %1137 = vmatprep.subr.mxu0 0.0
    %1138 = vmatpush1.msra.mxu0 0.0
    %1139 = vmatprep.subr.mxu0 0.0
    %1140 = vmatpush1.msra.mxu0 0.0
    %1141 = vmatprep.subr.mxu0 0.0
    %1142 = vmatpush1.msra.mxu0 0.0
    %1143 = vmatprep.subr.mxu0 0.0
    %1144 = vmatpush1.msra.mxu0 0.0
    %1145 = vmatprep.subr.mxu0 0.0
    %1146 = vmatpush1.msra.mxu0 0.0
    %1147 = vmatprep.subr.mxu0 0.0
    %1148 = vmatpush1.msra.mxu0 0.0
    %1149 = vmatprep.subr.mxu0 0.0
    %1150 = vmatpush1.msra.mxu0 0.0
    %1151 = vmatprep.subr.mxu0 0.0
    %1152 = vmatpush1.msra.mxu0 0.0
    %1153 = vmatprep.subr.mxu0 0.0
    %1154 = vmatpush1.msra.mxu0 0.0
    %1155 = vmatprep.subr.mxu0 0.0
    %1156 = vmatpush1.msra.mxu0 0.0
    %1157 = vmatprep.subr.mxu0 0.0
    %1158 = vmatpush1.msra.mxu0 0.0
    %1159 = vmatprep.subr.mxu0 0.0
    %1160 = vmatpush1.msra.mxu0 0.0
    %1161 = vmatprep.subr.mxu0 0.0
    %1162 = vmatpush1.msra.mxu0 %v752
    %1163 = vmatprep.subr.mxu0 0.0
    %1164 = vmatpush2.msra.mxu0 0.0
    %1165 = vmatprep.subr.mxu0 0.0
    %1166 = vmatpush2.msra.mxu0 0.0
    %1167 = vmatprep.subr.mxu0 0.0
    %1168 = vmatpush2.msra.mxu0 0.0
    %1169 = vmatprep.subr.mxu0 0.0
    %1170 = vmatpush2.msra.mxu0 0.0
    %1171 = vmatprep.subr.mxu0 0.0
    %1172 = vmatpush2.msra.mxu0 0.0
    %1173 = vmatprep.subr.mxu0 0.0
    %1174 = vmatpush2.msra.mxu0 0.0
    %1175 = vmatprep.subr.mxu0 0.0
    %1176 = vmatpush2.msra.mxu0 0.0
    %1177 = vmatprep.subr.mxu0 0.0
    %1178 = vmatpush2.msra.mxu0 0.0
    %1179 = vmatprep.subr.mxu0 0.0
    %1180 = vmatpush2.msra.mxu0 0.0
    %1181 = vmatprep.subr.mxu0 0.0
    %1182 = vmatpush2.msra.mxu0 0.0
    %1183 = vmatprep.subr.mxu0 0.0
    %1184 = vmatpush2.msra.mxu0 0.0
    %1185 = vmatprep.subr.mxu0 0.0
    %1186 = vmatpush2.msra.mxu0 0.0
    %1187 = vmatprep.subr.mxu0 0.0
    %1188 = vmatpush2.msra.mxu0 0.0
    %1189 = vmatprep.subr.mxu0 0.0
    %1190 = vmatpush2.msra.mxu0 0.0
    %1191 = vmatprep.subr.mxu0 0.0
    %1192 = vmatpush2.msra.mxu0 0.0
    %1193 = vmatprep.subr.mxu0 0.0
    %1194 = vmatpush2.msra.mxu0 0.0
    %1195 = vmatprep.mubr.f32.mxu0 0.0
    %1196 = vmatmul.mubr.f32.gmra.mxu0 %v1129
    %v1197 = vpop.f32.mrf.mxu0
    %v1198 = vadd.f32 %v765, %v1197
    %v1199 = vpop.f32.mrf.mxu0
    %1200 = vdwg.mxu0
    %v1202 = vsel %vm732, %v883, 0
    %1204 = vmatprep.subr.mxu0 0.0
    %1205 = vmatpush1.msra.mxu0 0.0
    %1206 = vmatprep.subr.mxu0 0.0
    %1207 = vmatpush1.msra.mxu0 0.0
    %1208 = vmatprep.subr.mxu0 0.0
    %1209 = vmatpush1.msra.mxu0 0.0
    %1210 = vmatprep.subr.mxu0 0.0
    %1211 = vmatpush1.msra.mxu0 0.0
    %1212 = vmatprep.subr.mxu0 0.0
    %1213 = vmatpush1.msra.mxu0 0.0
    %1214 = vmatprep.subr.mxu0 0.0
    %1215 = vmatpush1.msra.mxu0 0.0
    %1216 = vmatprep.subr.mxu0 0.0
    %1217 = vmatpush1.msra.mxu0 0.0
    %1218 = vmatprep.subr.mxu0 0.0
    %1219 = vmatpush1.msra.mxu0 0.0
    %1220 = vmatprep.subr.mxu0 0.0
    %1221 = vmatpush1.msra.mxu0 0.0
    %1222 = vmatprep.subr.mxu0 0.0
    %1223 = vmatpush1.msra.mxu0 0.0
    %1224 = vmatprep.subr.mxu0 0.0
    %1225 = vmatpush1.msra.mxu0 0.0
    %1226 = vmatprep.subr.mxu0 0.0
    %1227 = vmatpush1.msra.mxu0 0.0
    %1228 = vmatprep.subr.mxu0 0.0
    %1229 = vmatpush1.msra.mxu0 0.0
    %1230 = vmatprep.subr.mxu0 0.0
    %1231 = vmatpush1.msra.mxu0 0.0
    %1232 = vmatprep.subr.mxu0 0.0
    %1233 = vmatpush1.msra.mxu0 0.0
    %1234 = vmatprep.subr.mxu0 0.0
    %1235 = vmatpush1.msra.mxu0 %v753
    %1236 = vmatprep.subr.mxu0 0.0
    %1237 = vmatpush2.msra.mxu0 0.0
    %1238 = vmatprep.subr.mxu0 0.0
    %1239 = vmatpush2.msra.mxu0 0.0
    %1240 = vmatprep.subr.mxu0 0.0
    %1241 = vmatpush2.msra.mxu0 0.0
    %1242 = vmatprep.subr.mxu0 0.0
    %1243 = vmatpush2.msra.mxu0 0.0
    %1244 = vmatprep.subr.mxu0 0.0
    %1245 = vmatpush2.msra.mxu0 0.0
    %1246 = vmatprep.subr.mxu0 0.0
    %1247 = vmatpush2.msra.mxu0 0.0
    %1248 = vmatprep.subr.mxu0 0.0
    %1249 = vmatpush2.msra.mxu0 0.0
    %1250 = vmatprep.subr.mxu0 0.0
    %1251 = vmatpush2.msra.mxu0 0.0
    %1252 = vmatprep.subr.mxu0 0.0
    %1253 = vmatpush2.msra.mxu0 0.0
    %1254 = vmatprep.subr.mxu0 0.0
    %1255 = vmatpush2.msra.mxu0 0.0
    %1256 = vmatprep.subr.mxu0 0.0
    %1257 = vmatpush2.msra.mxu0 0.0
    %1258 = vmatprep.subr.mxu0 0.0
    %1259 = vmatpush2.msra.mxu0 0.0
    %1260 = vmatprep.subr.mxu0 0.0
    %1261 = vmatpush2.msra.mxu0 0.0
    %1262 = vmatprep.subr.mxu0 0.0
    %1263 = vmatpush2.msra.mxu0 0.0
    %1264 = vmatprep.subr.mxu0 0.0
    %1265 = vmatpush2.msra.mxu0 0.0
    %1266 = vmatprep.subr.mxu0 0.0
    %1267 = vmatpush2.msra.mxu0 0.0
    %1268 = vmatprep.mubr.f32.mxu0 0.0
    %1269 = vmatmul.mubr.f32.gmra.mxu0 %v1202
    %v1270 = vpop.f32.mrf.mxu0
    %v1271 = vadd.f32 %v771, %v1270
    %v1272 = vpop.f32.mrf.mxu0
    %1273 = vdwg.mxu0
    %v1275 = vsel %vm732, %v923, 0
    %1277 = vmatprep.subr.mxu0 0.0
    %1278 = vmatpush1.msra.mxu0 0.0
    %1279 = vmatprep.subr.mxu0 0.0
    %1280 = vmatpush1.msra.mxu0 0.0
    %1281 = vmatprep.subr.mxu0 0.0
    %1282 = vmatpush1.msra.mxu0 0.0
    %1283 = vmatprep.subr.mxu0 0.0
    %1284 = vmatpush1.msra.mxu0 0.0
    %1285 = vmatprep.subr.mxu0 0.0
    %1286 = vmatpush1.msra.mxu0 0.0
    %1287 = vmatprep.subr.mxu0 0.0
    %1288 = vmatpush1.msra.mxu0 0.0
    %1289 = vmatprep.subr.mxu0 0.0
    %1290 = vmatpush1.msra.mxu0 0.0
    %1291 = vmatprep.subr.mxu0 0.0
    %1292 = vmatpush1.msra.mxu0 0.0
    %1293 = vmatprep.subr.mxu0 0.0
    %1294 = vmatpush1.msra.mxu0 0.0
    %1295 = vmatprep.subr.mxu0 0.0
    %1296 = vmatpush1.msra.mxu0 0.0
    %1297 = vmatprep.subr.mxu0 0.0
    %1298 = vmatpush1.msra.mxu0 0.0
    %1299 = vmatprep.subr.mxu0 0.0
    %1300 = vmatpush1.msra.mxu0 0.0
    %1301 = vmatprep.subr.mxu0 0.0
    %1302 = vmatpush1.msra.mxu0 0.0
    %1303 = vmatprep.subr.mxu0 0.0
    %1304 = vmatpush1.msra.mxu0 0.0
    %1305 = vmatprep.subr.mxu0 0.0
    %1306 = vmatpush1.msra.mxu0 0.0
    %1307 = vmatprep.subr.mxu0 0.0
    %1308 = vmatpush1.msra.mxu0 %v754
    %1309 = vmatprep.subr.mxu0 0.0
    %1310 = vmatpush2.msra.mxu0 0.0
    %1311 = vmatprep.subr.mxu0 0.0
    %1312 = vmatpush2.msra.mxu0 0.0
    %1313 = vmatprep.subr.mxu0 0.0
    %1314 = vmatpush2.msra.mxu0 0.0
    %1315 = vmatprep.subr.mxu0 0.0
    %1316 = vmatpush2.msra.mxu0 0.0
    %1317 = vmatprep.subr.mxu0 0.0
    %1318 = vmatpush2.msra.mxu0 0.0
    %1319 = vmatprep.subr.mxu0 0.0
    %1320 = vmatpush2.msra.mxu0 0.0
    %1321 = vmatprep.subr.mxu0 0.0
    %1322 = vmatpush2.msra.mxu0 0.0
    %1323 = vmatprep.subr.mxu0 0.0
    %1324 = vmatpush2.msra.mxu0 0.0
    %1325 = vmatprep.subr.mxu0 0.0
    %1326 = vmatpush2.msra.mxu0 0.0
    %1327 = vmatprep.subr.mxu0 0.0
    %1328 = vmatpush2.msra.mxu0 0.0
    %1329 = vmatprep.subr.mxu0 0.0
    %1330 = vmatpush2.msra.mxu0 0.0
    %1331 = vmatprep.subr.mxu0 0.0
    %1332 = vmatpush2.msra.mxu0 0.0
    %1333 = vmatprep.subr.mxu0 0.0
    %1334 = vmatpush2.msra.mxu0 0.0
    %1335 = vmatprep.subr.mxu0 0.0
    %1336 = vmatpush2.msra.mxu0 0.0
    %1337 = vmatprep.subr.mxu0 0.0
    %1338 = vmatpush2.msra.mxu0 0.0
    %1339 = vmatprep.subr.mxu0 0.0
    %1340 = vmatpush2.msra.mxu0 0.0
    %1341 = vmatprep.mubr.f32.mxu0 0.0
    %1342 = vmatmul.mubr.f32.gmra.mxu0 %v1275
    %v1343 = vpop.f32.mrf.mxu0
    %v1344 = vadd.f32 %v777, %v1343
    %v1345 = vpop.f32.mrf.mxu0
    %1346 = vdwg.mxu0
    %v1348 = vsel %vm732, %v963, 0
    %1350 = vmatprep.subr.mxu0 0.0
    %1351 = vmatpush1.msra.mxu0 0.0
    %1352 = vmatprep.subr.mxu0 0.0
    %1353 = vmatpush1.msra.mxu0 0.0
    %1354 = vmatprep.subr.mxu0 0.0
    %1355 = vmatpush1.msra.mxu0 0.0
    %1356 = vmatprep.subr.mxu0 0.0
    %1357 = vmatpush1.msra.mxu0 0.0
    %1358 = vmatprep.subr.mxu0 0.0
    %1359 = vmatpush1.msra.mxu0 0.0
    %1360 = vmatprep.subr.mxu0 0.0
    %1361 = vmatpush1.msra.mxu0 0.0
    %1362 = vmatprep.subr.mxu0 0.0
    %1363 = vmatpush1.msra.mxu0 0.0
    %1364 = vmatprep.subr.mxu0 0.0
    %1365 = vmatpush1.msra.mxu0 0.0
    %1366 = vmatprep.subr.mxu0 0.0
    %1367 = vmatpush1.msra.mxu0 0.0
    %1368 = vmatprep.subr.mxu0 0.0
    %1369 = vmatpush1.msra.mxu0 0.0
    %1370 = vmatprep.subr.mxu0 0.0
    %1371 = vmatpush1.msra.mxu0 0.0
    %1372 = vmatprep.subr.mxu0 0.0
    %1373 = vmatpush1.msra.mxu0 0.0
    %1374 = vmatprep.subr.mxu0 0.0
    %1375 = vmatpush1.msra.mxu0 0.0
    %1376 = vmatprep.subr.mxu0 0.0
    %1377 = vmatpush1.msra.mxu0 0.0
    %1378 = vmatprep.subr.mxu0 0.0
    %1379 = vmatpush1.msra.mxu0 0.0
    %1380 = vmatprep.subr.mxu0 0.0
    %1381 = vmatpush1.msra.mxu0 %v755
    %1382 = vmatprep.subr.mxu0 0.0
    %1383 = vmatpush2.msra.mxu0 0.0
    %1384 = vmatprep.subr.mxu0 0.0
    %1385 = vmatpush2.msra.mxu0 0.0
    %1386 = vmatprep.subr.mxu0 0.0
    %1387 = vmatpush2.msra.mxu0 0.0
    %1388 = vmatprep.subr.mxu0 0.0
    %1389 = vmatpush2.msra.mxu0 0.0
    %1390 = vmatprep.subr.mxu0 0.0
    %1391 = vmatpush2.msra.mxu0 0.0
    %1392 = vmatprep.subr.mxu0 0.0
    %1393 = vmatpush2.msra.mxu0 0.0
    %1394 = vmatprep.subr.mxu0 0.0
    %1395 = vmatpush2.msra.mxu0 0.0
    %1396 = vmatprep.subr.mxu0 0.0
    %1397 = vmatpush2.msra.mxu0 0.0
    %1398 = vmatprep.subr.mxu0 0.0
    %1399 = vmatpush2.msra.mxu0 0.0
    %1400 = vmatprep.subr.mxu0 0.0
    %1401 = vmatpush2.msra.mxu0 0.0
    %1402 = vmatprep.subr.mxu0 0.0
    %1403 = vmatpush2.msra.mxu0 0.0
    %1404 = vmatprep.subr.mxu0 0.0
    %1405 = vmatpush2.msra.mxu0 0.0
    %1406 = vmatprep.subr.mxu0 0.0
    %1407 = vmatpush2.msra.mxu0 0.0
    %1408 = vmatprep.subr.mxu0 0.0
    %1409 = vmatpush2.msra.mxu0 0.0
    %1410 = vmatprep.subr.mxu0 0.0
    %1411 = vmatpush2.msra.mxu0 0.0
    %1412 = vmatprep.subr.mxu0 0.0
    %1413 = vmatpush2.msra.mxu0 0.0
    %1414 = vmatprep.mubr.f32.mxu0 0.0
    %1415 = vmatmul.mubr.f32.gmra.mxu0 %v1348
    %v1416 = vpop.f32.mrf.mxu0
    %v1417 = vadd.f32 %v783, %v1416
    %v1418 = vpop.f32.mrf.mxu0
    %1419 = vdwg.mxu0
    %v1421 = vsel %vm732, %v1003, 0
    %1423 = vmatprep.subr.mxu0 0.0
    %1424 = vmatpush1.msra.mxu0 0.0
    %1425 = vmatprep.subr.mxu0 0.0
    %1426 = vmatpush1.msra.mxu0 0.0
    %1427 = vmatprep.subr.mxu0 0.0
    %1428 = vmatpush1.msra.mxu0 0.0
    %1429 = vmatprep.subr.mxu0 0.0
    %1430 = vmatpush1.msra.mxu0 0.0
    %1431 = vmatprep.subr.mxu0 0.0
    %1432 = vmatpush1.msra.mxu0 0.0
    %1433 = vmatprep.subr.mxu0 0.0
    %1434 = vmatpush1.msra.mxu0 0.0
    %1435 = vmatprep.subr.mxu0 0.0
    %1436 = vmatpush1.msra.mxu0 0.0
    %1437 = vmatprep.subr.mxu0 0.0
    %1438 = vmatpush1.msra.mxu0 0.0
    %1439 = vmatprep.subr.mxu0 0.0
    %1440 = vmatpush1.msra.mxu0 0.0
    %1441 = vmatprep.subr.mxu0 0.0
    %1442 = vmatpush1.msra.mxu0 0.0
    %1443 = vmatprep.subr.mxu0 0.0
    %1444 = vmatpush1.msra.mxu0 0.0
    %1445 = vmatprep.subr.mxu0 0.0
    %1446 = vmatpush1.msra.mxu0 0.0
    %1447 = vmatprep.subr.mxu0 0.0
    %1448 = vmatpush1.msra.mxu0 0.0
    %1449 = vmatprep.subr.mxu0 0.0
    %1450 = vmatpush1.msra.mxu0 0.0
    %1451 = vmatprep.subr.mxu0 0.0
    %1452 = vmatpush1.msra.mxu0 0.0
    %1453 = vmatprep.subr.mxu0 0.0
    %1454 = vmatpush1.msra.mxu0 %v756
    %1455 = vmatprep.subr.mxu0 0.0
    %1456 = vmatpush2.msra.mxu0 0.0
    %1457 = vmatprep.subr.mxu0 0.0
    %1458 = vmatpush2.msra.mxu0 0.0
    %1459 = vmatprep.subr.mxu0 0.0
    %1460 = vmatpush2.msra.mxu0 0.0
    %1461 = vmatprep.subr.mxu0 0.0
    %1462 = vmatpush2.msra.mxu0 0.0
    %1463 = vmatprep.subr.mxu0 0.0
    %1464 = vmatpush2.msra.mxu0 0.0
    %1465 = vmatprep.subr.mxu0 0.0
    %1466 = vmatpush2.msra.mxu0 0.0
    %1467 = vmatprep.subr.mxu0 0.0
    %1468 = vmatpush2.msra.mxu0 0.0
    %1469 = vmatprep.subr.mxu0 0.0
    %1470 = vmatpush2.msra.mxu0 0.0
    %1471 = vmatprep.subr.mxu0 0.0
    %1472 = vmatpush2.msra.mxu0 0.0
    %1473 = vmatprep.subr.mxu0 0.0
    %1474 = vmatpush2.msra.mxu0 0.0
    %1475 = vmatprep.subr.mxu0 0.0
    %1476 = vmatpush2.msra.mxu0 0.0
    %1477 = vmatprep.subr.mxu0 0.0
    %1478 = vmatpush2.msra.mxu0 0.0
    %1479 = vmatprep.subr.mxu0 0.0
    %1480 = vmatpush2.msra.mxu0 0.0
    %1481 = vmatprep.subr.mxu0 0.0
    %1482 = vmatpush2.msra.mxu0 0.0
    %1483 = vmatprep.subr.mxu0 0.0
    %1484 = vmatpush2.msra.mxu0 0.0
    %1485 = vmatprep.subr.mxu0 0.0
    %1486 = vmatpush2.msra.mxu0 0.0
    %1487 = vmatprep.mubr.f32.mxu0 0.0
    %1488 = vmatmul.mubr.f32.gmra.mxu0 %v1421
    %v1489 = vpop.f32.mrf.mxu0
    %v1490 = vadd.f32 %v789, %v1489
    %v1491 = vpop.f32.mrf.mxu0
    %1492 = vdwg.mxu0
    %v1494 = vsel %vm732, %v1043, 0
    %1496 = vmatprep.subr.mxu0 0.0
    %1497 = vmatpush1.msra.mxu0 0.0
    %1498 = vmatprep.subr.mxu0 0.0
    %1499 = vmatpush1.msra.mxu0 0.0
    %1500 = vmatprep.subr.mxu0 0.0
    %1501 = vmatpush1.msra.mxu0 0.0
    %1502 = vmatprep.subr.mxu0 0.0
    %1503 = vmatpush1.msra.mxu0 0.0
    %1504 = vmatprep.subr.mxu0 0.0
    %1505 = vmatpush1.msra.mxu0 0.0
    %1506 = vmatprep.subr.mxu0 0.0
    %1507 = vmatpush1.msra.mxu0 0.0
    %1508 = vmatprep.subr.mxu0 0.0
    %1509 = vmatpush1.msra.mxu0 0.0
    %1510 = vmatprep.subr.mxu0 0.0
    %1511 = vmatpush1.msra.mxu0 0.0
    %1512 = vmatprep.subr.mxu0 0.0
    %1513 = vmatpush1.msra.mxu0 0.0
    %1514 = vmatprep.subr.mxu0 0.0
    %1515 = vmatpush1.msra.mxu0 0.0
    %1516 = vmatprep.subr.mxu0 0.0
    %1517 = vmatpush1.msra.mxu0 0.0
    %1518 = vmatprep.subr.mxu0 0.0
    %1519 = vmatpush1.msra.mxu0 0.0
    %1520 = vmatprep.subr.mxu0 0.0
    %1521 = vmatpush1.msra.mxu0 0.0
    %1522 = vmatprep.subr.mxu0 0.0
    %1523 = vmatpush1.msra.mxu0 0.0
    %1524 = vmatprep.subr.mxu0 0.0
    %1525 = vmatpush1.msra.mxu0 0.0
    %1526 = vmatprep.subr.mxu0 0.0
    %1527 = vmatpush1.msra.mxu0 %v757
    %1528 = vmatprep.subr.mxu0 0.0
    %1529 = vmatpush2.msra.mxu0 0.0
    %1530 = vmatprep.subr.mxu0 0.0
    %1531 = vmatpush2.msra.mxu0 0.0
    %1532 = vmatprep.subr.mxu0 0.0
    %1533 = vmatpush2.msra.mxu0 0.0
    %1534 = vmatprep.subr.mxu0 0.0
    %1535 = vmatpush2.msra.mxu0 0.0
    %1536 = vmatprep.subr.mxu0 0.0
    %1537 = vmatpush2.msra.mxu0 0.0
    %1538 = vmatprep.subr.mxu0 0.0
    %1539 = vmatpush2.msra.mxu0 0.0
    %1540 = vmatprep.subr.mxu0 0.0
    %1541 = vmatpush2.msra.mxu0 0.0
    %1542 = vmatprep.subr.mxu0 0.0
    %1543 = vmatpush2.msra.mxu0 0.0
    %1544 = vmatprep.subr.mxu0 0.0
    %1545 = vmatpush2.msra.mxu0 0.0
    %1546 = vmatprep.subr.mxu0 0.0
    %1547 = vmatpush2.msra.mxu0 0.0
    %1548 = vmatprep.subr.mxu0 0.0
    %1549 = vmatpush2.msra.mxu0 0.0
    %1550 = vmatprep.subr.mxu0 0.0
    %1551 = vmatpush2.msra.mxu0 0.0
    %1552 = vmatprep.subr.mxu0 0.0
    %1553 = vmatpush2.msra.mxu0 0.0
    %1554 = vmatprep.subr.mxu0 0.0
    %1555 = vmatpush2.msra.mxu0 0.0
    %1556 = vmatprep.subr.mxu0 0.0
    %1557 = vmatpush2.msra.mxu0 0.0
    %1558 = vmatprep.subr.mxu0 0.0
    %1559 = vmatpush2.msra.mxu0 0.0
    %1560 = vmatprep.mubr.f32.mxu0 0.0
    %1561 = vmatmul.mubr.f32.gmra.mxu0 %v1494
    %v1562 = vpop.f32.mrf.mxu0
    %v1563 = vadd.f32 %v795, %v1562
    %v1564 = vpop.f32.mrf.mxu0
    %1565 = vdwg.mxu0
    %v1567 = vsel %vm732, %v1083, 0
    %1569 = vmatprep.subr.mxu0 0.0
    %1570 = vmatpush1.msra.mxu0 0.0
    %1571 = vmatprep.subr.mxu0 0.0
    %1572 = vmatpush1.msra.mxu0 0.0
    %1573 = vmatprep.subr.mxu0 0.0
    %1574 = vmatpush1.msra.mxu0 0.0
    %1575 = vmatprep.subr.mxu0 0.0
    %1576 = vmatpush1.msra.mxu0 0.0
    %1577 = vmatprep.subr.mxu0 0.0
    %1578 = vmatpush1.msra.mxu0 0.0
    %1579 = vmatprep.subr.mxu0 0.0
    %1580 = vmatpush1.msra.mxu0 0.0
    %1581 = vmatprep.subr.mxu0 0.0
    %1582 = vmatpush1.msra.mxu0 0.0
    %1583 = vmatprep.subr.mxu0 0.0
    %1584 = vmatpush1.msra.mxu0 0.0
    %1585 = vmatprep.subr.mxu0 0.0
    %1586 = vmatpush1.msra.mxu0 0.0
    %1587 = vmatprep.subr.mxu0 0.0
    %1588 = vmatpush1.msra.mxu0 0.0
    %1589 = vmatprep.subr.mxu0 0.0
    %1590 = vmatpush1.msra.mxu0 0.0
    %1591 = vmatprep.subr.mxu0 0.0
    %1592 = vmatpush1.msra.mxu0 0.0
    %1593 = vmatprep.subr.mxu0 0.0
    %1594 = vmatpush1.msra.mxu0 0.0
    %1595 = vmatprep.subr.mxu0 0.0
    %1596 = vmatpush1.msra.mxu0 0.0
    %1597 = vmatprep.subr.mxu0 0.0
    %1598 = vmatpush1.msra.mxu0 0.0
    %1599 = vmatprep.subr.mxu0 0.0
    %1600 = vmatpush1.msra.mxu0 %v758
    %1601 = vmatprep.subr.mxu0 0.0
    %1602 = vmatpush2.msra.mxu0 0.0
    %1603 = vmatprep.subr.mxu0 0.0
    %1604 = vmatpush2.msra.mxu0 0.0
    %1605 = vmatprep.subr.mxu0 0.0
    %1606 = vmatpush2.msra.mxu0 0.0
    %1607 = vmatprep.subr.mxu0 0.0
    %1608 = vmatpush2.msra.mxu0 0.0
    %1609 = vmatprep.subr.mxu0 0.0
    %1610 = vmatpush2.msra.mxu0 0.0
    %1611 = vmatprep.subr.mxu0 0.0
    %1612 = vmatpush2.msra.mxu0 0.0
    %1613 = vmatprep.subr.mxu0 0.0
    %1614 = vmatpush2.msra.mxu0 0.0
    %1615 = vmatprep.subr.mxu0 0.0
    %1616 = vmatpush2.msra.mxu0 0.0
    %1617 = vmatprep.subr.mxu0 0.0
    %1618 = vmatpush2.msra.mxu0 0.0
    %1619 = vmatprep.subr.mxu0 0.0
    %1620 = vmatpush2.msra.mxu0 0.0
    %1621 = vmatprep.subr.mxu0 0.0
    %1622 = vmatpush2.msra.mxu0 0.0
    %1623 = vmatprep.subr.mxu0 0.0
    %1624 = vmatpush2.msra.mxu0 0.0
    %1625 = vmatprep.subr.mxu0 0.0
    %1626 = vmatpush2.msra.mxu0 0.0
    %1627 = vmatprep.subr.mxu0 0.0
    %1628 = vmatpush2.msra.mxu0 0.0
    %1629 = vmatprep.subr.mxu0 0.0
    %1630 = vmatpush2.msra.mxu0 0.0
    %1631 = vmatprep.subr.mxu0 0.0
    %1632 = vmatpush2.msra.mxu0 0.0
    %1633 = vmatprep.mubr.f32.mxu0 0.0
    %1634 = vmatmul.mubr.f32.gmra.mxu0 %v1567
    %v1635 = vpop.f32.mrf.mxu0
    %v1636 = vadd.f32 %v801, %v1635
    %v1637 = vpop.f32.mrf.mxu0
    %1638 = vdwg.mxu0
    %v1640 = vsel %vm732, %v1123, 0
    %1642 = vmatprep.subr.mxu0 0.0
    %1643 = vmatpush1.msra.mxu0 0.0
    %1644 = vmatprep.subr.mxu0 0.0
    %1645 = vmatpush1.msra.mxu0 0.0
    %1646 = vmatprep.subr.mxu0 0.0
    %1647 = vmatpush1.msra.mxu0 0.0
    %1648 = vmatprep.subr.mxu0 0.0
    %1649 = vmatpush1.msra.mxu0 0.0
    %1650 = vmatprep.subr.mxu0 0.0
    %1651 = vmatpush1.msra.mxu0 0.0
    %1652 = vmatprep.subr.mxu0 0.0
    %1653 = vmatpush1.msra.mxu0 0.0
    %1654 = vmatprep.subr.mxu0 0.0
    %1655 = vmatpush1.msra.mxu0 0.0
    %1656 = vmatprep.subr.mxu0 0.0
    %1657 = vmatpush1.msra.mxu0 0.0
    %1658 = vmatprep.subr.mxu0 0.0
    %1659 = vmatpush1.msra.mxu0 0.0
    %1660 = vmatprep.subr.mxu0 0.0
    %1661 = vmatpush1.msra.mxu0 0.0
    %1662 = vmatprep.subr.mxu0 0.0
    %1663 = vmatpush1.msra.mxu0 0.0
    %1664 = vmatprep.subr.mxu0 0.0
    %1665 = vmatpush1.msra.mxu0 0.0
    %1666 = vmatprep.subr.mxu0 0.0
    %1667 = vmatpush1.msra.mxu0 0.0
    %1668 = vmatprep.subr.mxu0 0.0
    %1669 = vmatpush1.msra.mxu0 0.0
    %1670 = vmatprep.subr.mxu0 0.0
    %1671 = vmatpush1.msra.mxu0 0.0
    %1672 = vmatprep.subr.mxu0 0.0
    %1673 = vmatpush1.msra.mxu0 %v759
    %1674 = vmatprep.subr.mxu0 0.0
    %1675 = vmatpush2.msra.mxu0 0.0
    %1676 = vmatprep.subr.mxu0 0.0
    %1677 = vmatpush2.msra.mxu0 0.0
    %1678 = vmatprep.subr.mxu0 0.0
    %1679 = vmatpush2.msra.mxu0 0.0
    %1680 = vmatprep.subr.mxu0 0.0
    %1681 = vmatpush2.msra.mxu0 0.0
    %1682 = vmatprep.subr.mxu0 0.0
    %1683 = vmatpush2.msra.mxu0 0.0
    %1684 = vmatprep.subr.mxu0 0.0
    %1685 = vmatpush2.msra.mxu0 0.0
    %1686 = vmatprep.subr.mxu0 0.0
    %1687 = vmatpush2.msra.mxu0 0.0
    %1688 = vmatprep.subr.mxu0 0.0
    %1689 = vmatpush2.msra.mxu0 0.0
    %1690 = vmatprep.subr.mxu0 0.0
    %1691 = vmatpush2.msra.mxu0 0.0
    %1692 = vmatprep.subr.mxu0 0.0
    %1693 = vmatpush2.msra.mxu0 0.0
    %1694 = vmatprep.subr.mxu0 0.0
    %1695 = vmatpush2.msra.mxu0 0.0
    %1696 = vmatprep.subr.mxu0 0.0
    %1697 = vmatpush2.msra.mxu0 0.0
    %1698 = vmatprep.subr.mxu0 0.0
    %1699 = vmatpush2.msra.mxu0 0.0
    %1700 = vmatprep.subr.mxu0 0.0
    %1701 = vmatpush2.msra.mxu0 0.0
    %1702 = vmatprep.subr.mxu0 0.0
    %1703 = vmatpush2.msra.mxu0 0.0
    %1704 = vmatprep.subr.mxu0 0.0
    %1705 = vmatpush2.msra.mxu0 0.0
    %1706 = vmatprep.mubr.f32.mxu0 0.0
    %1707 = vmatmul.mubr.f32.gmra.mxu0 %v1640
    %v1708 = vpop.f32.mrf.mxu0
    %v1709 = vadd.f32 %v807, %v1708
    %v1710 = vpop.f32.mrf.mxu0
    %1711 = vdwg.mxu0
    %v1712 = vmul.f32 %v1198, 0.1
    %v1713 = vmul.f32 %v1271, 0.1
    %v1714 = vmul.f32 %v1344, 0.1
    %v1715 = vmul.f32 %v1417, 0.1
    %v1716 = vmul.f32 %v1490, 0.1
    %v1717 = vmul.f32 %v1563, 0.1
    %v1718 = vmul.f32 %v1636, 0.1
    %v1719 = vmul.f32 %v1709, 0.1
    %v1720 = vsub.f32 %v350, %v1712
    %v1721 = vsub.f32 %v353, %v1713
    %v1722 = vsub.f32 %v358, %v1714
    %v1723 = vsub.f32 %v361, %v1715
    %v1724 = vsub.f32 %v366, %v1716
    %v1725 = vsub.f32 %v369, %v1717
    %v1726 = vsub.f32 %v374, %v1718
    %v1727 = vsub.f32 %v377, %v1719
    %v1728 = vmax.f32 %v1720, 0.0
    %v1729 = vmax.f32 %v1721, 0.0
    %v1730 = vmax.f32 %v1722, 0.0
    %v1731 = vmax.f32 %v1723, 0.0
    %v1732 = vmax.f32 %v1724, 0.0
    %v1733 = vmax.f32 %v1725, 0.0
    %v1734 = vmax.f32 %v1726, 0.0
    %v1735 = vmax.f32 %v1727, 0.0
    %v1736 = vmul.f32 %v640, 0.1
    %v1737 = vmul.f32 %v646, 0.1
    %v1738 = vmul.f32 %v652, 0.1
    %v1739 = vmul.f32 %v658, 0.1
    %v1740 = vmul.f32 %v664, 0.1
    %v1741 = vmul.f32 %v670, 0.1
    %v1742 = vmul.f32 %v676, 0.1
    %v1743 = vmul.f32 %v682, 0.1
    %v1744 = vsub.f32 %v114, %v1736
    %v1745 = vsub.f32 %v114, %v1737
    %v1746 = vsub.f32 %v114, %v1738
    %v1747 = vsub.f32 %v114, %v1739
    %v1748 = vsub.f32 %v114, %v1740
    %v1749 = vsub.f32 %v114, %v1741
    %v1750 = vsub.f32 %v114, %v1742
    %v1751 = vsub.f32 %v114, %v1743
    %v1752 = vmul.f32 %v735, 0.1
    %v1753 = vsub.f32 %v418, %v1752
    %v1762 = vlaneseq
    %v1763 = vshrl.u32 %v1762, 7
    %v1764 = vsub.s32 0, %v1763
    %v1765 = vrot.slane %v1744, %v1764
    %v1766 = vlaneseq
    %v1767 = vshrl.u32 %v1766, 7
    %v1768 = vsub.s32 0, %v1767
    %v1769 = vrot.slane %v1745, %v1768
    %v1770 = vlaneseq
    %v1771 = vshrl.u32 %v1770, 7
    %v1772 = vsub.s32 0, %v1771
    %v1773 = vrot.slane %v1746, %v1772
    %v1774 = vlaneseq
    %v1775 = vshrl.u32 %v1774, 7
    %v1776 = vsub.s32 0, %v1775
    %v1777 = vrot.slane %v1747, %v1776
    %v1778 = vlaneseq
    %v1779 = vshrl.u32 %v1778, 7
    %v1780 = vsub.s32 0, %v1779
    %v1781 = vrot.slane %v1748, %v1780
    %v1782 = vlaneseq
    %v1783 = vshrl.u32 %v1782, 7
    %v1784 = vsub.s32 0, %v1783
    %v1785 = vrot.slane %v1749, %v1784
    %v1786 = vlaneseq
    %v1787 = vshrl.u32 %v1786, 7
    %v1788 = vsub.s32 0, %v1787
    %v1789 = vrot.slane %v1750, %v1788
    %v1790 = vlaneseq
    %v1791 = vshrl.u32 %v1790, 7
    %v1792 = vsub.s32 0, %v1791
    %v1793 = vrot.slane %v1751, %v1792
    %v1802 = vmul.f32 %v1728, %v1765
    %v1803 = vmul.f32 %v1729, %v1769
    %v1804 = vmul.f32 %v1730, %v1773
    %v1805 = vmul.f32 %v1731, %v1777
    %v1806 = vmul.f32 %v1732, %v1781
    %v1807 = vmul.f32 %v1733, %v1785
    %v1808 = vmul.f32 %v1734, %v1789
    %v1809 = vmul.f32 %v1735, %v1793
    %1810 = vadd.xlane.f32.xlu0 %v1802
    %v1811 = vpop.xlane.xlu0 %1810
    %1812 = vadd.xlane.f32.xlu0 %v1803
    %v1813 = vpop.xlane.xlu0 %1812
    %1814 = vadd.xlane.f32.xlu0 %v1804
    %v1815 = vpop.xlane.xlu0 %1814
    %1816 = vadd.xlane.f32.xlu0 %v1805
    %v1817 = vpop.xlane.xlu0 %1816
    %1818 = vadd.xlane.f32.xlu0 %v1806
    %v1819 = vpop.xlane.xlu0 %1818
    %1820 = vadd.xlane.f32.xlu0 %v1807
    %v1821 = vpop.xlane.xlu0 %1820
    %1822 = vadd.xlane.f32.xlu0 %v1808
    %v1823 = vpop.xlane.xlu0 %1822
    %1824 = vadd.xlane.f32.xlu0 %v1809
    %v1825 = vpop.xlane.xlu0 %1824
    %v1827 = vlaneseq
    %v1828 = vshrl.u32 %v1827, 7
    %v1829 = vsub.s32 0, %v1828
    %v1830 = vrot.slane %v1753, %v1829
    %v1831 = vlaneseq
    %v1832 = vshrl.u32 %v1831, 7
    %v1833 = vsub.s32 1, %v1832
    %v1834 = vrot.slane %v1753, %v1833
    %v1835 = vlaneseq
    %v1836 = vshrl.u32 %v1835, 7
    %v1837 = vsub.s32 2, %v1836
    %v1838 = vrot.slane %v1753, %v1837
    %v1839 = vlaneseq
    %v1840 = vshrl.u32 %v1839, 7
    %v1841 = vsub.s32 3, %v1840
    %v1842 = vrot.slane %v1753, %v1841
    %v1843 = vlaneseq
    %v1844 = vshrl.u32 %v1843, 7
    %v1845 = vsub.s32 4, %v1844
    %v1846 = vrot.slane %v1753, %v1845
    %v1847 = vlaneseq
    %v1848 = vshrl.u32 %v1847, 7
    %v1849 = vsub.s32 5, %v1848
    %v1850 = vrot.slane %v1753, %v1849
    %v1851 = vlaneseq
    %v1852 = vshrl.u32 %v1851, 7
    %v1853 = vsub.s32 6, %v1852
    %v1854 = vrot.slane %v1753, %v1853
    %v1855 = vlaneseq
    %v1856 = vshrl.u32 %v1855, 7
    %v1857 = vsub.s32 7, %v1856
    %v1858 = vrot.slane %v1753, %v1857
    %v1867 = vadd.f32 %v1811, %v1830
    %v1868 = vadd.f32 %v1813, %v1834
    %v1869 = vadd.f32 %v1815, %v1838
    %v1870 = vadd.f32 %v1817, %v1842
    %v1871 = vadd.f32 %v1819, %v1846
    %v1872 = vadd.f32 %v1821, %v1850
    %v1873 = vadd.f32 %v1823, %v1854
    %v1874 = vadd.f32 %v1825, %v1858
    %v1875 = vmax.f32 %v1867, 0.0
    %v1876 = vmax.f32 %v1868, 0.0
    %v1877 = vmax.f32 %v1869, 0.0
    %v1878 = vmax.f32 %v1870, 0.0
    %v1879 = vmax.f32 %v1871, 0.0
    %v1880 = vmax.f32 %v1872, 0.0
    %v1881 = vmax.f32 %v1873, 0.0
    %v1882 = vmax.f32 %v1874, 0.0
    %v1891 = vlaneseq
    %v1892 = vshrl.u32 %v1891, 7
    %v1893 = vsub.s32 0, %v1892
    %v1894 = vrot.slane %v140, %v1893
    %v1895 = vlaneseq
    %v1896 = vshrl.u32 %v1895, 7
    %v1897 = vsub.s32 0, %v1896
    %v1898 = vrot.slane %v141, %v1897
    %v1899 = vlaneseq
    %v1900 = vshrl.u32 %v1899, 7
    %v1901 = vsub.s32 0, %v1900
    %v1902 = vrot.slane %v142, %v1901
    %v1903 = vlaneseq
    %v1904 = vshrl.u32 %v1903, 7
    %v1905 = vsub.s32 0, %v1904
    %v1906 = vrot.slane %v143, %v1905
    %v1907 = vlaneseq
    %v1908 = vshrl.u32 %v1907, 7
    %v1909 = vsub.s32 0, %v1908
    %v1910 = vrot.slane %v144, %v1909
    %v1911 = vlaneseq
    %v1912 = vshrl.u32 %v1911, 7
    %v1913 = vsub.s32 0, %v1912
    %v1914 = vrot.slane %v145, %v1913
    %v1915 = vlaneseq
    %v1916 = vshrl.u32 %v1915, 7
    %v1917 = vsub.s32 0, %v1916
    %v1918 = vrot.slane %v146, %v1917
    %v1919 = vlaneseq
    %v1920 = vshrl.u32 %v1919, 7
    %v1921 = vsub.s32 0, %v1920
    %v1922 = vrot.slane %v147, %v1921
    %1924 = vbcast.lane.b32.xlu0 %v1894, 256
    %v1925 = vpop.permute.xlu0 %1924
    %1927 = vbcast.lane.b32.xlu0 %v1898, 256
    %v1928 = vpop.permute.xlu0 %1927
    %1930 = vbcast.lane.b32.xlu0 %v1902, 256
    %v1931 = vpop.permute.xlu0 %1930
    %1933 = vbcast.lane.b32.xlu0 %v1906, 256
    %v1934 = vpop.permute.xlu0 %1933
    %1936 = vbcast.lane.b32.xlu0 %v1910, 256
    %v1937 = vpop.permute.xlu0 %1936
    %1939 = vbcast.lane.b32.xlu0 %v1914, 256
    %v1940 = vpop.permute.xlu0 %1939
    %1942 = vbcast.lane.b32.xlu0 %v1918, 256
    %v1943 = vpop.permute.xlu0 %1942
    %1945 = vbcast.lane.b32.xlu0 %v1922, 256
    %v1946 = vpop.permute.xlu0 %1945
    %v1955 = vmul.f32 %v1867, %v1925
    %v1956 = vmul.f32 %v1868, %v1928
    %v1957 = vmul.f32 %v1869, %v1931
    %v1958 = vmul.f32 %v1870, %v1934
    %v1959 = vmul.f32 %v1871, %v1937
    %v1960 = vmul.f32 %v1872, %v1940
    %v1961 = vmul.f32 %v1873, %v1943
    %v1962 = vmul.f32 %v1874, %v1946
    %v1963 = vsub.f32 %v1875, %v1955
    %v1964 = vsub.f32 %v1876, %v1956
    %v1965 = vsub.f32 %v1877, %v1957
    %v1966 = vsub.f32 %v1878, %v1958
    %v1967 = vsub.f32 %v1879, %v1959
    %v1968 = vsub.f32 %v1880, %v1960
    %v1969 = vsub.f32 %v1881, %v1961
    %v1970 = vsub.f32 %v1882, %v1962
    %v1971 = vand.u32 2147483647, %v1867
    %v1972 = vand.u32 2147483647, %v1868
    %v1973 = vand.u32 2147483647, %v1869
    %v1974 = vand.u32 2147483647, %v1870
    %v1975 = vand.u32 2147483647, %v1871
    %v1976 = vand.u32 2147483647, %v1872
    %v1977 = vand.u32 2147483647, %v1873
    %v1978 = vand.u32 2147483647, %v1874
    %v1979 = vsub.f32 0.0, %v1971
    %v1980 = vsub.f32 0.0, %v1972
    %v1981 = vsub.f32 0.0, %v1973
    %v1982 = vsub.f32 0.0, %v1974
    %v1983 = vsub.f32 0.0, %v1975
    %v1984 = vsub.f32 0.0, %v1976
    %v1985 = vsub.f32 0.0, %v1977
    %v1986 = vsub.f32 0.0, %v1978
    %v1987 = vmul.f32 %v1979, 1.442695
    %v1988 = vpow.pop %v1987
    %v1989 = vmul.f32 %v1980, 1.442695
    %v1990 = vpow.pop %v1989
    %v1991 = vmul.f32 %v1981, 1.442695
    %v1992 = vpow.pop %v1991
    %v1993 = vmul.f32 %v1982, 1.442695
    %v1994 = vpow.pop %v1993
    %v1995 = vmul.f32 %v1983, 1.442695
    %v1996 = vpow.pop %v1995
    %v1997 = vmul.f32 %v1984, 1.442695
    %v1998 = vpow.pop %v1997
    %v1999 = vmul.f32 %v1985, 1.442695
    %v2000 = vpow.pop %v1999
    %v2001 = vmul.f32 %v1986, 1.442695
    %v2002 = vpow.pop %v2001
    %v2003 = vadd.f32 %v1988, 1.0
    %v2004 = vlog2.pop %v2003
    %v2005 = vmul.f32 %v2004, 0.6931472
    %v2006 = vmul.f32 -0.5, %v1988
    %v2007 = vadd.f32 %v2006, 1.0
    %v2008 = vmul.f32 %v2007, %v1988
    %v2009 = vand.u32 2147483647, %v1988
    %vm2010 = vcmp.lt.f32.partialorder %v2009, 0.0004427343
    %v2011 = vsel %vm2010, %v2008, %v2005
    %v2012 = vadd.f32 %v1990, 1.0
    %v2013 = vlog2.pop %v2012
    %v2014 = vmul.f32 %v2013, 0.6931472
    %v2015 = vmul.f32 -0.5, %v1990
    %v2016 = vadd.f32 %v2015, 1.0
    %v2017 = vmul.f32 %v2016, %v1990
    %v2018 = vand.u32 2147483647, %v1990
    %vm2019 = vcmp.lt.f32.partialorder %v2018, 0.0004427343
    %v2020 = vsel %vm2019, %v2017, %v2014
    %v2021 = vadd.f32 %v1992, 1.0
    %v2022 = vlog2.pop %v2021
    %v2023 = vmul.f32 %v2022, 0.6931472
    %v2024 = vmul.f32 -0.5, %v1992
    %v2025 = vadd.f32 %v2024, 1.0
    %v2026 = vmul.f32 %v2025, %v1992
    %v2027 = vand.u32 2147483647, %v1992
    %vm2028 = vcmp.lt.f32.partialorder %v2027, 0.0004427343
    %v2029 = vsel %vm2028, %v2026, %v2023
    %v2030 = vadd.f32 %v1994, 1.0
    %v2031 = vlog2.pop %v2030
    %v2032 = vmul.f32 %v2031, 0.6931472
    %v2033 = vmul.f32 -0.5, %v1994
    %v2034 = vadd.f32 %v2033, 1.0
    %v2035 = vmul.f32 %v2034, %v1994
    %v2036 = vand.u32 2147483647, %v1994
    %vm2037 = vcmp.lt.f32.partialorder %v2036, 0.0004427343
    %v2038 = vsel %vm2037, %v2035, %v2032
    %v2039 = vadd.f32 %v1996, 1.0
    %v2040 = vlog2.pop %v2039
    %v2041 = vmul.f32 %v2040, 0.6931472
    %v2042 = vmul.f32 -0.5, %v1996
    %v2043 = vadd.f32 %v2042, 1.0
    %v2044 = vmul.f32 %v2043, %v1996
    %v2045 = vand.u32 2147483647, %v1996
    %vm2046 = vcmp.lt.f32.partialorder %v2045, 0.0004427343
    %v2047 = vsel %vm2046, %v2044, %v2041
    %v2048 = vadd.f32 %v1998, 1.0
    %v2049 = vlog2.pop %v2048
    %v2050 = vmul.f32 %v2049, 0.6931472
    %v2051 = vmul.f32 -0.5, %v1998
    %v2052 = vadd.f32 %v2051, 1.0
    %v2053 = vmul.f32 %v2052, %v1998
    %v2054 = vand.u32 2147483647, %v1998
    %vm2055 = vcmp.lt.f32.partialorder %v2054, 0.0004427343
    %v2056 = vsel %vm2055, %v2053, %v2050
    %v2057 = vadd.f32 %v2000, 1.0
    %v2058 = vlog2.pop %v2057
    %v2059 = vmul.f32 %v2058, 0.6931472
    %v2060 = vmul.f32 -0.5, %v2000
    %v2061 = vadd.f32 %v2060, 1.0
    %v2062 = vmul.f32 %v2061, %v2000
    %v2063 = vand.u32 2147483647, %v2000
    %vm2064 = vcmp.lt.f32.partialorder %v2063, 0.0004427343
    %v2065 = vsel %vm2064, %v2062, %v2059
    %v2066 = vadd.f32 %v2002, 1.0
    %v2067 = vlog2.pop %v2066
    %v2068 = vmul.f32 %v2067, 0.6931472
    %v2069 = vmul.f32 -0.5, %v2002
    %v2070 = vadd.f32 %v2069, 1.0
    %v2071 = vmul.f32 %v2070, %v2002
    %v2072 = vand.u32 2147483647, %v2002
    %vm2073 = vcmp.lt.f32.partialorder %v2072, 0.0004427343
    %v2074 = vsel %vm2073, %v2071, %v2068
    %v2075 = vadd.f32 %v1963, %v2011
    %v2076 = vadd.f32 %v1964, %v2020
    %v2077 = vadd.f32 %v1965, %v2029
    %v2078 = vadd.f32 %v1966, %v2038
    %v2079 = vadd.f32 %v1967, %v2047
    %v2080 = vadd.f32 %v1968, %v2056
    %v2081 = vadd.f32 %v1969, %v2065
    %v2082 = vadd.f32 %v1970, %v2074
    %2091 = vset.pattern.permute.xlu0 0
    %2092 = vperm.xlu0 %2091, %v2075
    %v2093 = vpop.permute.xlu0 %2092
    %2094 = vset.pattern.permute.xlu0 0
    %2095 = vperm.xlu0 %2094, %v2076
    %v2096 = vpop.permute.xlu0 %2095
    %2097 = vset.pattern.permute.xlu0 0
    %2098 = vperm.xlu0 %2097, %v2077
    %v2099 = vpop.permute.xlu0 %2098
    %2100 = vset.pattern.permute.xlu0 0
    %2101 = vperm.xlu0 %2100, %v2078
    %v2102 = vpop.permute.xlu0 %2101
    %2103 = vset.pattern.permute.xlu0 0
    %2104 = vperm.xlu0 %2103, %v2079
    %v2105 = vpop.permute.xlu0 %2104
    %2106 = vset.pattern.permute.xlu0 0
    %2107 = vperm.xlu0 %2106, %v2080
    %v2108 = vpop.permute.xlu0 %2107
    %2109 = vset.pattern.permute.xlu0 0
    %2110 = vperm.xlu0 %2109, %v2081
    %v2111 = vpop.permute.xlu0 %2110
    %2112 = vset.pattern.permute.xlu0 0
    %2113 = vperm.xlu0 %2112, %v2082
    %v2114 = vpop.permute.xlu0 %2113
    %v2115 = vlaneseq
    %v2116 = vshrl.u32 %v2115, 7
    %v2117 = vsub.s32 %v684, %v2116
    %v2118 = vrot.slane %v2093, %v2117
    %v2119 = vlaneseq
    %v2120 = vshrl.u32 %v2119, 7
    %v2121 = vsub.s32 %v684, %v2120
    %v2122 = vrot.slane %v2096, %v2121
    %v2123 = vlaneseq
    %v2124 = vshrl.u32 %v2123, 7
    %v2125 = vsub.s32 %v684, %v2124
    %v2126 = vrot.slane %v2099, %v2125
    %v2127 = vlaneseq
    %v2128 = vshrl.u32 %v2127, 7
    %v2129 = vsub.s32 %v684, %v2128
    %v2130 = vrot.slane %v2102, %v2129
    %v2131 = vlaneseq
    %v2132 = vshrl.u32 %v2131, 7
    %v2133 = vsub.s32 %v684, %v2132
    %v2134 = vrot.slane %v2105, %v2133
    %v2135 = vlaneseq
    %v2136 = vshrl.u32 %v2135, 7
    %v2137 = vsub.s32 %v684, %v2136
    %v2138 = vrot.slane %v2108, %v2137
    %v2139 = vlaneseq
    %v2140 = vshrl.u32 %v2139, 7
    %v2141 = vsub.s32 %v684, %v2140
    %v2142 = vrot.slane %v2111, %v2141
    %v2143 = vlaneseq
    %v2144 = vshrl.u32 %v2143, 7
    %v2145 = vsub.s32 %v684, %v2144
    %v2146 = vrot.slane %v2114, %v2145
    %v2147 = vsel %vm717, %v2122, %v2118
    %v2148 = vsel %vm719, %v2126, %v2147
    %v2149 = vsel %vm721, %v2130, %v2148
    %v2150 = vsel %vm723, %v2134, %v2149
    %v2151 = vsel %vm725, %v2138, %v2150
    %v2152 = vsel %vm727, %v2142, %v2151
    %v2153 = vsel %vm729, %v2146, %v2152
    %v2155 = vsel %vm732, %v2153, 0.0
    %2156 = vadd.xlane.f32.xlu0 %v2155
    %v2157 = vpop.xlane.xlu0 %2156
    %v2158 = vrcp.pop 8.0
    %v2159 = vmul.f32 %v2157, %v2158
    %vm2160 = vcmp.gt.f32.partialorder %v1867, 0.0
    %vm2161 = vcmp.gt.f32.partialorder %v1868, 0.0
    %vm2162 = vcmp.gt.f32.partialorder %v1869, 0.0
    %vm2163 = vcmp.gt.f32.partialorder %v1870, 0.0
    %vm2164 = vcmp.gt.f32.partialorder %v1871, 0.0
    %vm2165 = vcmp.gt.f32.partialorder %v1872, 0.0
    %vm2166 = vcmp.gt.f32.partialorder %v1873, 0.0
    %vm2167 = vcmp.gt.f32.partialorder %v1874, 0.0
    %v2168 = vsel %vm2160, 1, 0
    %v2169 = vsel %vm2161, 1, 0
    %v2170 = vsel %vm2162, 1, 0
    %v2171 = vsel %vm2163, 1, 0
    %v2172 = vsel %vm2164, 1, 0
    %v2173 = vsel %vm2165, 1, 0
    %v2174 = vsel %vm2166, 1, 0
    %v2175 = vsel %vm2167, 1, 0
    %v2176 = vcvt.s32.f32 %v2168
    %v2177 = vcvt.s32.f32 %v2169
    %v2178 = vcvt.s32.f32 %v2170
    %v2179 = vcvt.s32.f32 %v2171
    %v2180 = vcvt.s32.f32 %v2172
    %v2181 = vcvt.s32.f32 %v2173
    %v2182 = vcvt.s32.f32 %v2174
    %v2183 = vcvt.s32.f32 %v2175
    %vm2184 = vcmp.eq.f32.partialorder %v2176, %v1925
    %vm2185 = vcmp.eq.f32.partialorder %v2177, %v1928
    %vm2186 = vcmp.eq.f32.partialorder %v2178, %v1931
    %vm2187 = vcmp.eq.f32.partialorder %v2179, %v1934
    %vm2188 = vcmp.eq.f32.partialorder %v2180, %v1937
    %vm2189 = vcmp.eq.f32.partialorder %v2181, %v1940
    %vm2190 = vcmp.eq.f32.partialorder %v2182, %v1943
    %vm2191 = vcmp.eq.f32.partialorder %v2183, %v1946
    %v2192 = vsel %vm2184, 1, 0
    %v2193 = vsel %vm2185, 1, 0
    %v2194 = vsel %vm2186, 1, 0
    %v2195 = vsel %vm2187, 1, 0
    %v2196 = vsel %vm2188, 1, 0
    %v2197 = vsel %vm2189, 1, 0
    %v2198 = vsel %vm2190, 1, 0
    %v2199 = vsel %vm2191, 1, 0
    %v2200 = vcvt.s32.f32 %v2192
    %v2201 = vcvt.s32.f32 %v2193
    %v2202 = vcvt.s32.f32 %v2194
    %v2203 = vcvt.s32.f32 %v2195
    %v2204 = vcvt.s32.f32 %v2196
    %v2205 = vcvt.s32.f32 %v2197
    %v2206 = vcvt.s32.f32 %v2198
    %v2207 = vcvt.s32.f32 %v2199
    %2216 = vset.pattern.permute.xlu0 0
    %2217 = vperm.xlu0 %2216, %v2200
    %v2218 = vpop.permute.xlu0 %2217
    %2219 = vset.pattern.permute.xlu0 0
    %2220 = vperm.xlu0 %2219, %v2201
    %v2221 = vpop.permute.xlu0 %2220
    %2222 = vset.pattern.permute.xlu0 0
    %2223 = vperm.xlu0 %2222, %v2202
    %v2224 = vpop.permute.xlu0 %2223
    %2225 = vset.pattern.permute.xlu0 0
    %2226 = vperm.xlu0 %2225, %v2203
    %v2227 = vpop.permute.xlu0 %2226
    %2228 = vset.pattern.permute.xlu0 0
    %2229 = vperm.xlu0 %2228, %v2204
    %v2230 = vpop.permute.xlu0 %2229
    %2231 = vset.pattern.permute.xlu0 0
    %2232 = vperm.xlu0 %2231, %v2205
    %v2233 = vpop.permute.xlu0 %2232
    %2234 = vset.pattern.permute.xlu0 0
    %2235 = vperm.xlu0 %2234, %v2206
    %v2236 = vpop.permute.xlu0 %2235
    %2237 = vset.pattern.permute.xlu0 0
    %2238 = vperm.xlu0 %2237, %v2207
    %v2239 = vpop.permute.xlu0 %2238
    %v2240 = vlaneseq
    %v2241 = vshrl.u32 %v2240, 7
    %v2242 = vsub.s32 %v684, %v2241
    %v2243 = vrot.slane %v2218, %v2242
    %v2244 = vlaneseq
    %v2245 = vshrl.u32 %v2244, 7
    %v2246 = vsub.s32 %v684, %v2245
    %v2247 = vrot.slane %v2221, %v2246
    %v2248 = vlaneseq
    %v2249 = vshrl.u32 %v2248, 7
    %v2250 = vsub.s32 %v684, %v2249
    %v2251 = vrot.slane %v2224, %v2250
    %v2252 = vlaneseq
    %v2253 = vshrl.u32 %v2252, 7
    %v2254 = vsub.s32 %v684, %v2253
    %v2255 = vrot.slane %v2227, %v2254
    %v2256 = vlaneseq
    %v2257 = vshrl.u32 %v2256, 7
    %v2258 = vsub.s32 %v684, %v2257
    %v2259 = vrot.slane %v2230, %v2258
    %v2260 = vlaneseq
    %v2261 = vshrl.u32 %v2260, 7
    %v2262 = vsub.s32 %v684, %v2261
    %v2263 = vrot.slane %v2233, %v2262
    %v2264 = vlaneseq
    %v2265 = vshrl.u32 %v2264, 7
    %v2266 = vsub.s32 %v684, %v2265
    %v2267 = vrot.slane %v2236, %v2266
    %v2268 = vlaneseq
    %v2269 = vshrl.u32 %v2268, 7
    %v2270 = vsub.s32 %v684, %v2269
    %v2271 = vrot.slane %v2239, %v2270
    %v2272 = vsel %vm717, %v2247, %v2243
    %v2273 = vsel %vm719, %v2251, %v2272
    %v2274 = vsel %vm721, %v2255, %v2273
    %v2275 = vsel %vm723, %v2259, %v2274
    %v2276 = vsel %vm725, %v2263, %v2275
    %v2277 = vsel %vm727, %v2267, %v2276
    %v2278 = vsel %vm729, %v2271, %v2277
    %v2280 = vsel %vm732, %v2278, 0.0
    %2281 = vadd.xlane.f32.xlu0 %v2280
    %v2282 = vpop.xlane.xlu0 %2281
    %v2283 = vmul.f32 %v2282, %v2158
    %v2284 = vmul.f32 %v2176, %v1925
    %v2285 = vmul.f32 %v2177, %v1928
    %v2286 = vmul.f32 %v2178, %v1931
    %v2287 = vmul.f32 %v2179, %v1934
    %v2288 = vmul.f32 %v2180, %v1937
    %v2289 = vmul.f32 %v2181, %v1940
    %v2290 = vmul.f32 %v2182, %v1943
    %v2291 = vmul.f32 %v2183, %v1946
    %2300 = vset.pattern.permute.xlu0 0
    %2301 = vperm.xlu0 %2300, %v2284
    %v2302 = vpop.permute.xlu0 %2301
    %2303 = vset.pattern.permute.xlu0 0
    %2304 = vperm.xlu0 %2303, %v2285
    %v2305 = vpop.permute.xlu0 %2304
    %2306 = vset.pattern.permute.xlu0 0
    %2307 = vperm.xlu0 %2306, %v2286
    %v2308 = vpop.permute.xlu0 %2307
    %2309 = vset.pattern.permute.xlu0 0
    %2310 = vperm.xlu0 %2309, %v2287
    %v2311 = vpop.permute.xlu0 %2310
    %2312 = vset.pattern.permute.xlu0 0
    %2313 = vperm.xlu0 %2312, %v2288
    %v2314 = vpop.permute.xlu0 %2313
    %2315 = vset.pattern.permute.xlu0 0
    %2316 = vperm.xlu0 %2315, %v2289
    %v2317 = vpop.permute.xlu0 %2316
    %2318 = vset.pattern.permute.xlu0 0
    %2319 = vperm.xlu0 %2318, %v2290
    %v2320 = vpop.permute.xlu0 %2319
    %2321 = vset.pattern.permute.xlu0 0
    %2322 = vperm.xlu0 %2321, %v2291
    %v2323 = vpop.permute.xlu0 %2322
    %v2324 = vlaneseq
    %v2325 = vshrl.u32 %v2324, 7
    %v2326 = vsub.s32 %v684, %v2325
    %v2327 = vrot.slane %v2302, %v2326
    %v2328 = vlaneseq
    %v2329 = vshrl.u32 %v2328, 7
    %v2330 = vsub.s32 %v684, %v2329
    %v2331 = vrot.slane %v2305, %v2330
    %v2332 = vlaneseq
    %v2333 = vshrl.u32 %v2332, 7
    %v2334 = vsub.s32 %v684, %v2333
    %v2335 = vrot.slane %v2308, %v2334
    %v2336 = vlaneseq
    %v2337 = vshrl.u32 %v2336, 7
    %v2338 = vsub.s32 %v684, %v2337
    %v2339 = vrot.slane %v2311, %v2338
    %v2340 = vlaneseq
    %v2341 = vshrl.u32 %v2340, 7
    %v2342 = vsub.s32 %v684, %v2341
    %v2343 = vrot.slane %v2314, %v2342
    %v2344 = vlaneseq
    %v2345 = vshrl.u32 %v2344, 7
    %v2346 = vsub.s32 %v684, %v2345
    %v2347 = vrot.slane %v2317, %v2346
    %v2348 = vlaneseq
    %v2349 = vshrl.u32 %v2348, 7
    %v2350 = vsub.s32 %v684, %v2349
    %v2351 = vrot.slane %v2320, %v2350
    %v2352 = vlaneseq
    %v2353 = vshrl.u32 %v2352, 7
    %v2354 = vsub.s32 %v684, %v2353
    %v2355 = vrot.slane %v2323, %v2354
    %v2356 = vsel %vm717, %v2331, %v2327
    %v2357 = vsel %vm719, %v2335, %v2356
    %v2358 = vsel %vm721, %v2339, %v2357
    %v2359 = vsel %vm723, %v2343, %v2358
    %v2360 = vsel %vm725, %v2347, %v2359
    %v2361 = vsel %vm727, %v2351, %v2360
    %v2362 = vsel %vm729, %v2355, %v2361
    %v2364 = vsel %vm732, %v2362, 0.0
    %2365 = vadd.xlane.f32.xlu0 %v2364
    %v2366 = vpop.xlane.xlu0 %2365
    %v2367 = vsub.f32 1.0, %v2176
    %v2368 = vsub.f32 1.0, %v2177
    %v2369 = vsub.f32 1.0, %v2178
    %v2370 = vsub.f32 1.0, %v2179
    %v2371 = vsub.f32 1.0, %v2180
    %v2372 = vsub.f32 1.0, %v2181
    %v2373 = vsub.f32 1.0, %v2182
    %v2374 = vsub.f32 1.0, %v2183
    %v2375 = vmul.f32 %v2367, %v1925
    %v2376 = vmul.f32 %v2368, %v1928
    %v2377 = vmul.f32 %v2369, %v1931
    %v2378 = vmul.f32 %v2370, %v1934
    %v2379 = vmul.f32 %v2371, %v1937
    %v2380 = vmul.f32 %v2372, %v1940
    %v2381 = vmul.f32 %v2373, %v1943
    %v2382 = vmul.f32 %v2374, %v1946
    %2391 = vset.pattern.permute.xlu0 0
    %2392 = vperm.xlu0 %2391, %v2375
    %v2393 = vpop.permute.xlu0 %2392
    %2394 = vset.pattern.permute.xlu0 0
    %2395 = vperm.xlu0 %2394, %v2376
    %v2396 = vpop.permute.xlu0 %2395
    %2397 = vset.pattern.permute.xlu0 0
    %2398 = vperm.xlu0 %2397, %v2377
    %v2399 = vpop.permute.xlu0 %2398
    %2400 = vset.pattern.permute.xlu0 0
    %2401 = vperm.xlu0 %2400, %v2378
    %v2402 = vpop.permute.xlu0 %2401
    %2403 = vset.pattern.permute.xlu0 0
    %2404 = vperm.xlu0 %2403, %v2379
    %v2405 = vpop.permute.xlu0 %2404
    %2406 = vset.pattern.permute.xlu0 0
    %2407 = vperm.xlu0 %2406, %v2380
    %v2408 = vpop.permute.xlu0 %2407
    %2409 = vset.pattern.permute.xlu0 0
    %2410 = vperm.xlu0 %2409, %v2381
    %v2411 = vpop.permute.xlu0 %2410
    %2412 = vset.pattern.permute.xlu0 0
    %2413 = vperm.xlu0 %2412, %v2382
    %v2414 = vpop.permute.xlu0 %2413
    %v2415 = vlaneseq
    %v2416 = vshrl.u32 %v2415, 7
    %v2417 = vsub.s32 %v684, %v2416
    %v2418 = vrot.slane %v2393, %v2417
    %v2419 = vlaneseq
    %v2420 = vshrl.u32 %v2419, 7
    %v2421 = vsub.s32 %v684, %v2420
    %v2422 = vrot.slane %v2396, %v2421
    %v2423 = vlaneseq
    %v2424 = vshrl.u32 %v2423, 7
    %v2425 = vsub.s32 %v684, %v2424
    %v2426 = vrot.slane %v2399, %v2425
    %v2427 = vlaneseq
    %v2428 = vshrl.u32 %v2427, 7
    %v2429 = vsub.s32 %v684, %v2428
    %v2430 = vrot.slane %v2402, %v2429
    %v2431 = vlaneseq
    %v2432 = vshrl.u32 %v2431, 7
    %v2433 = vsub.s32 %v684, %v2432
    %v2434 = vrot.slane %v2405, %v2433
    %v2435 = vlaneseq
    %v2436 = vshrl.u32 %v2435, 7
    %v2437 = vsub.s32 %v684, %v2436
    %v2438 = vrot.slane %v2408, %v2437
    %v2439 = vlaneseq
    %v2440 = vshrl.u32 %v2439, 7
    %v2441 = vsub.s32 %v684, %v2440
    %v2442 = vrot.slane %v2411, %v2441
    %v2443 = vlaneseq
    %v2444 = vshrl.u32 %v2443, 7
    %v2445 = vsub.s32 %v684, %v2444
    %v2446 = vrot.slane %v2414, %v2445
    %v2447 = vsel %vm717, %v2422, %v2418
    %v2448 = vsel %vm719, %v2426, %v2447
    %v2449 = vsel %vm721, %v2430, %v2448
    %v2450 = vsel %vm723, %v2434, %v2449
    %v2451 = vsel %vm725, %v2438, %v2450
    %v2452 = vsel %vm727, %v2442, %v2451
    %v2453 = vsel %vm729, %v2446, %v2452
    %v2455 = vsel %vm732, %v2453, 0.0
    %2456 = vadd.xlane.f32.xlu0 %v2455
    %v2457 = vpop.xlane.xlu0 %2456
    %v2458 = vsub.f32 1.0, %v140
    %v2459 = vsub.f32 1.0, %v141
    %v2460 = vsub.f32 1.0, %v142
    %v2461 = vsub.f32 1.0, %v143
    %v2462 = vsub.f32 1.0, %v144
    %v2463 = vsub.f32 1.0, %v145
    %v2464 = vsub.f32 1.0, %v146
    %v2465 = vsub.f32 1.0, %v147
    %v2474 = vlaneseq
    %v2475 = vshrl.u32 %v2474, 7
    %v2476 = vsub.s32 0, %v2475
    %v2477 = vrot.slane %v2458, %v2476
    %v2478 = vlaneseq
    %v2479 = vshrl.u32 %v2478, 7
    %v2480 = vsub.s32 0, %v2479
    %v2481 = vrot.slane %v2459, %v2480
    %v2482 = vlaneseq
    %v2483 = vshrl.u32 %v2482, 7
    %v2484 = vsub.s32 0, %v2483
    %v2485 = vrot.slane %v2460, %v2484
    %v2486 = vlaneseq
    %v2487 = vshrl.u32 %v2486, 7
    %v2488 = vsub.s32 0, %v2487
    %v2489 = vrot.slane %v2461, %v2488
    %v2490 = vlaneseq
    %v2491 = vshrl.u32 %v2490, 7
    %v2492 = vsub.s32 0, %v2491
    %v2493 = vrot.slane %v2462, %v2492
    %v2494 = vlaneseq
    %v2495 = vshrl.u32 %v2494, 7
    %v2496 = vsub.s32 0, %v2495
    %v2497 = vrot.slane %v2463, %v2496
    %v2498 = vlaneseq
    %v2499 = vshrl.u32 %v2498, 7
    %v2500 = vsub.s32 0, %v2499
    %v2501 = vrot.slane %v2464, %v2500
    %v2502 = vlaneseq
    %v2503 = vshrl.u32 %v2502, 7
    %v2504 = vsub.s32 0, %v2503
    %v2505 = vrot.slane %v2465, %v2504
    %2507 = vbcast.lane.b32.xlu0 %v2477, 256
    %v2508 = vpop.permute.xlu0 %2507
    %2510 = vbcast.lane.b32.xlu0 %v2481, 256
    %v2511 = vpop.permute.xlu0 %2510
    %2513 = vbcast.lane.b32.xlu0 %v2485, 256
    %v2514 = vpop.permute.xlu0 %2513
    %2516 = vbcast.lane.b32.xlu0 %v2489, 256
    %v2517 = vpop.permute.xlu0 %2516
    %2519 = vbcast.lane.b32.xlu0 %v2493, 256
    %v2520 = vpop.permute.xlu0 %2519
    %2522 = vbcast.lane.b32.xlu0 %v2497, 256
    %v2523 = vpop.permute.xlu0 %2522
    %2525 = vbcast.lane.b32.xlu0 %v2501, 256
    %v2526 = vpop.permute.xlu0 %2525
    %2528 = vbcast.lane.b32.xlu0 %v2505, 256
    %v2529 = vpop.permute.xlu0 %2528
    %v2538 = vmul.f32 %v2176, %v2508
    %v2539 = vmul.f32 %v2177, %v2511
    %v2540 = vmul.f32 %v2178, %v2514
    %v2541 = vmul.f32 %v2179, %v2517
    %v2542 = vmul.f32 %v2180, %v2520
    %v2543 = vmul.f32 %v2181, %v2523
    %v2544 = vmul.f32 %v2182, %v2526
    %v2545 = vmul.f32 %v2183, %v2529
    %2554 = vset.pattern.permute.xlu0 0
    %2555 = vperm.xlu0 %2554, %v2538
    %v2556 = vpop.permute.xlu0 %2555
    %2557 = vset.pattern.permute.xlu0 0
    %2558 = vperm.xlu0 %2557, %v2539
    %v2559 = vpop.permute.xlu0 %2558
    %2560 = vset.pattern.permute.xlu0 0
    %2561 = vperm.xlu0 %2560, %v2540
    %v2562 = vpop.permute.xlu0 %2561
    %2563 = vset.pattern.permute.xlu0 0
    %2564 = vperm.xlu0 %2563, %v2541
    %v2565 = vpop.permute.xlu0 %2564
    %2566 = vset.pattern.permute.xlu0 0
    %2567 = vperm.xlu0 %2566, %v2542
    %v2568 = vpop.permute.xlu0 %2567
    %2569 = vset.pattern.permute.xlu0 0
    %2570 = vperm.xlu0 %2569, %v2543
    %v2571 = vpop.permute.xlu0 %2570
    %2572 = vset.pattern.permute.xlu0 0
    %2573 = vperm.xlu0 %2572, %v2544
    %v2574 = vpop.permute.xlu0 %2573
    %2575 = vset.pattern.permute.xlu0 0
    %2576 = vperm.xlu0 %2575, %v2545
    %v2577 = vpop.permute.xlu0 %2576
    %v2578 = vlaneseq
    %v2579 = vshrl.u32 %v2578, 7
    %v2580 = vsub.s32 %v684, %v2579
    %v2581 = vrot.slane %v2556, %v2580
    %v2582 = vlaneseq
    %v2583 = vshrl.u32 %v2582, 7
    %v2584 = vsub.s32 %v684, %v2583
    %v2585 = vrot.slane %v2559, %v2584
    %v2586 = vlaneseq
    %v2587 = vshrl.u32 %v2586, 7
    %v2588 = vsub.s32 %v684, %v2587
    %v2589 = vrot.slane %v2562, %v2588
    %v2590 = vlaneseq
    %v2591 = vshrl.u32 %v2590, 7
    %v2592 = vsub.s32 %v684, %v2591
    %v2593 = vrot.slane %v2565, %v2592
    %v2594 = vlaneseq
    %v2595 = vshrl.u32 %v2594, 7
    %v2596 = vsub.s32 %v684, %v2595
    %v2597 = vrot.slane %v2568, %v2596
    %v2598 = vlaneseq
    %v2599 = vshrl.u32 %v2598, 7
    %v2600 = vsub.s32 %v684, %v2599
    %v2601 = vrot.slane %v2571, %v2600
    %v2602 = vlaneseq
    %v2603 = vshrl.u32 %v2602, 7
    %v2604 = vsub.s32 %v684, %v2603
    %v2605 = vrot.slane %v2574, %v2604
    %v2606 = vlaneseq
    %v2607 = vshrl.u32 %v2606, 7
    %v2608 = vsub.s32 %v684, %v2607
    %v2609 = vrot.slane %v2577, %v2608
    %v2610 = vsel %vm717, %v2585, %v2581
    %v2611 = vsel %vm719, %v2589, %v2610
    %v2612 = vsel %vm721, %v2593, %v2611
    %v2613 = vsel %vm723, %v2597, %v2612
    %v2614 = vsel %vm725, %v2601, %v2613
    %v2615 = vsel %vm727, %v2605, %v2614
    %v2616 = vsel %vm729, %v2609, %v2615
    %v2618 = vsel %vm732, %v2616, 0.0
    %2619 = vadd.xlane.f32.xlu0 %v2618
    %v2620 = vpop.xlane.xlu0 %2619
    %v2621 = vmul.f32 %v2367, %v2508
    %v2622 = vmul.f32 %v2368, %v2511
    %v2623 = vmul.f32 %v2369, %v2514
    %v2624 = vmul.f32 %v2370, %v2517
    %v2625 = vmul.f32 %v2371, %v2520
    %v2626 = vmul.f32 %v2372, %v2523
    %v2627 = vmul.f32 %v2373, %v2526
    %v2628 = vmul.f32 %v2374, %v2529
    %2637 = vset.pattern.permute.xlu0 0
    %2638 = vperm.xlu0 %2637, %v2621
    %v2639 = vpop.permute.xlu0 %2638
    %2640 = vset.pattern.permute.xlu0 0
    %2641 = vperm.xlu0 %2640, %v2622
    %v2642 = vpop.permute.xlu0 %2641
    %2643 = vset.pattern.permute.xlu0 0
    %2644 = vperm.xlu0 %2643, %v2623
    %v2645 = vpop.permute.xlu0 %2644
    %2646 = vset.pattern.permute.xlu0 0
    %2647 = vperm.xlu0 %2646, %v2624
    %v2648 = vpop.permute.xlu0 %2647
    %2649 = vset.pattern.permute.xlu0 0
    %2650 = vperm.xlu0 %2649, %v2625
    %v2651 = vpop.permute.xlu0 %2650
    %2652 = vset.pattern.permute.xlu0 0
    %2653 = vperm.xlu0 %2652, %v2626
    %v2654 = vpop.permute.xlu0 %2653
    %2655 = vset.pattern.permute.xlu0 0
    %2656 = vperm.xlu0 %2655, %v2627
    %v2657 = vpop.permute.xlu0 %2656
    %2658 = vset.pattern.permute.xlu0 0
    %2659 = vperm.xlu0 %2658, %v2628
    %v2660 = vpop.permute.xlu0 %2659
    %v2661 = vlaneseq
    %v2662 = vshrl.u32 %v2661, 7
    %v2663 = vsub.s32 %v684, %v2662
    %v2664 = vrot.slane %v2639, %v2663
    %v2665 = vlaneseq
    %v2666 = vshrl.u32 %v2665, 7
    %v2667 = vsub.s32 %v684, %v2666
    %v2668 = vrot.slane %v2642, %v2667
    %v2669 = vlaneseq
    %v2670 = vshrl.u32 %v2669, 7
    %v2671 = vsub.s32 %v684, %v2670
    %v2672 = vrot.slane %v2645, %v2671
    %v2673 = vlaneseq
    %v2674 = vshrl.u32 %v2673, 7
    %v2675 = vsub.s32 %v684, %v2674
    %v2676 = vrot.slane %v2648, %v2675
    %v2677 = vlaneseq
    %v2678 = vshrl.u32 %v2677, 7
    %v2679 = vsub.s32 %v684, %v2678
    %v2680 = vrot.slane %v2651, %v2679
    %v2681 = vlaneseq
    %v2682 = vshrl.u32 %v2681, 7
    %v2683 = vsub.s32 %v684, %v2682
    %v2684 = vrot.slane %v2654, %v2683
    %v2685 = vlaneseq
    %v2686 = vshrl.u32 %v2685, 7
    %v2687 = vsub.s32 %v684, %v2686
    %v2688 = vrot.slane %v2657, %v2687
    %v2689 = vlaneseq
    %v2690 = vshrl.u32 %v2689, 7
    %v2691 = vsub.s32 %v684, %v2690
    %v2692 = vrot.slane %v2660, %v2691
    %v2693 = vsel %vm717, %v2668, %v2664
    %v2694 = vsel %vm719, %v2672, %v2693
    %v2695 = vsel %vm721, %v2676, %v2694
    %v2696 = vsel %vm723, %v2680, %v2695
    %v2697 = vsel %vm725, %v2684, %v2696
    %v2698 = vsel %vm727, %v2688, %v2697
    %v2699 = vsel %vm729, %v2692, %v2698
    %v2701 = vsel %vm732, %v2699, 0.0
    %2702 = vadd.xlane.f32.xlu0 %v2701
    %v2703 = vpop.xlane.xlu0 %2702
    %v2704 = vadd.f32 %v2366, %v2457
    %v2705 = vmax.f32 %v2704, 1.0
    %v2706 = vrcp.pop %v2705
    %v2707 = vmul.f32 %v2366, %v2706
    %v2708 = vadd.f32 %v2620, %v2703
    %v2709 = vmax.f32 %v2708, 1.0
    %v2710 = vrcp.pop %v2709
    %v2711 = vmul.f32 %v2620, %v2710
    %vm2712 = vcmask 7168
    %2713 = vst.msk [vmem:[%s8] sm:$0xff] %vm2712, %v2159
    %vm2714 = vcmask 15368
    %2715 = vst.msk [vmem:[%s8] sm:$0xff] %vm2714, %v2283
    %vm2716 = vcmask 23568
    %2717 = vst.msk [vmem:[%s8] sm:$0xff] %vm2716, %v2707
    %vm2718 = vcmask 31768
    %2719 = vst.msk [vmem:[%s8] sm:$0xff] %vm2718, %v2711
    // Predicated region
    $region54: #{tpu_custom_call.1} parent=1 // pred_check
      _
    $region55: #{tpu_custom_call.1} parent=1 // pred_check_branch
      %2721 = sbr.rel (0) target = $region57
    $region56: #{tpu_custom_call.1} parent=1 // pred_region
      _
    $region57: #{tpu_custom_call.1} parent=1 // pred_fallthru
      _
    // Predicated region
    $region58: #{tpu_custom_call.1} parent=1 // pred_check
      _
    $region59: #{tpu_custom_call.1} parent=1 // pred_check_branch
      %2723 = sbr.rel (0) target = $region61
    $region60: #{tpu_custom_call.1} parent=1 // pred_region
      _
    $region61: #{tpu_custom_call.1} parent=1 // pred_fallthru
      _
    %2724 = vsyncpa [#allocation4], 1
    %2725 = vsyncpa [#allocation6], 1
    %2726 = vsyncpa [#allocation9], 1

</llo_original>
